<compile_context>
chip_gen: v7x
topology: tpu7x:2x2x1
jax: 0.10.0
libtpu: 0.0.40
codegen_flags: <defaults>
</compile_context>

<pallas_src>
import functools

import jax
import jax.numpy as jnp
import numpy as np
from jax.experimental import pallas as pl
from jax.experimental.pallas import tpu as pltpu


def _gelu_f32(x):
    # tanh-approximate GELU, computed in f32 on VPU/EUP.
    return jax.nn.gelu(x, approximate=True)


# ---------------------------------------------------------------------------
# Fused kernels.  Grid = (M // tm, F // tf).
#   i = token-tile index (parallel), j = inner-dim-tile index (reduction).
# ---------------------------------------------------------------------------
def _ff_gelu_kernel(x_ref, w1_ref, b1_ref, w2_ref, b2_ref, o_ref, acc_ref):
    # x:(tm,D) bf16  w1:(D,tf) bf16  b1:(1,tf) f32  w2:(tf,Dout) bf16  b2:(1,Dout) f32
    j = pl.program_id(1)

    @pl.when(j == 0)
    def _():
        acc_ref[...] = jnp.zeros_like(acc_ref)

    h = jnp.dot(x_ref[...], w1_ref[...], preferred_element_type=jnp.float32)
    h = h + b1_ref[...]                       # (tm, tf) f32
    y = _gelu_f32(h).astype(w2_ref.dtype)     # bf16 into second MXU matmul
    acc_ref[...] += jnp.dot(y, w2_ref[...], preferred_element_type=jnp.float32)

    @pl.when(j == pl.num_programs(1) - 1)
    def _():
        o_ref[...] = (acc_ref[...] + b2_ref[...]).astype(o_ref.dtype)


def _ff_geglu_kernel(x_ref, wv_ref, wg_ref, bv_ref, bg_ref, w2_ref, b2_ref,
                     o_ref, acc_ref):
    j = pl.program_id(1)

    @pl.when(j == 0)
    def _():
        acc_ref[...] = jnp.zeros_like(acc_ref)

    x = x_ref[...]
    val = jnp.dot(x, wv_ref[...], preferred_element_type=jnp.float32) + bv_ref[...]
    gate = jnp.dot(x, wg_ref[...], preferred_element_type=jnp.float32) + bg_ref[...]
    y = (val * _gelu_f32(gate)).astype(w2_ref.dtype)
    acc_ref[...] += jnp.dot(y, w2_ref[...], preferred_element_type=jnp.float32)

    @pl.when(j == pl.num_programs(1) - 1)
    def _():
        o_ref[...] = (acc_ref[...] + b2_ref[...]).astype(o_ref.dtype)


# ---------------------------------------------------------------------------
# Wrapper
# ---------------------------------------------------------------------------
def _pick_tile(n, prefs):
    for t in prefs:
        if n % t == 0:
            return t
    return n


def feed_forward(params, x, *, glu, tm=None, tf=None,
                 compute_dtype=jnp.bfloat16, out_dtype=None):
    """x: (..., dim) -> (..., dim_out). Fused Linear -> GELU/GEGLU -> Linear."""
    orig_shape = x.shape
    D = orig_shape[-1]
    xm = x.reshape(-1, D)
    M = xm.shape[0]
    F, Dout = params["w2"].shape
    out_dtype = out_dtype or x.dtype

    tm = tm or _pick_tile(M, (256, 128, 64, 32, 16, 8))
    tf = tf or _pick_tile(F, (512, 256, 128))
    grid = (M // tm, F // tf)

    xm = xm.astype(compute_dtype)
    w2 = params["w2"].astype(compute_dtype)
    b2 = params["b2"].reshape(1, Dout).astype(jnp.float32)

    cparams = pltpu.CompilerParams(
        dimension_semantics=("parallel", "arbitrary"),
        vmem_limit_bytes=48 * 1024 * 1024,
    )
    scratch = [pltpu.VMEM((tm, Dout), jnp.float32)]
    out_shape = jax.ShapeDtypeStruct((M, Dout), out_dtype)

    x_spec = pl.BlockSpec((tm, D), lambda i, j: (i, 0))
    o_spec = pl.BlockSpec((tm, Dout), lambda i, j: (i, 0))
    w2_spec = pl.BlockSpec((tf, Dout), lambda i, j: (j, 0))
    b2_spec = pl.BlockSpec((1, Dout), lambda i, j: (0, 0))
    w1_spec = pl.BlockSpec((D, tf), lambda i, j: (0, j))
    b1_spec = pl.BlockSpec((1, tf), lambda i, j: (0, j))

    if glu:
        wv = params["w1_val"].astype(compute_dtype)
        wg = params["w1_gate"].astype(compute_dtype)
        bv = params["b1_val"].reshape(1, F).astype(jnp.float32)
        bg = params["b1_gate"].reshape(1, F).astype(jnp.float32)
        out = pl.pallas_call(
            _ff_geglu_kernel,
            out_shape=out_shape,
            grid=grid,
            in_specs=[x_spec, w1_spec, w1_spec, b1_spec, b1_spec, w2_spec, b2_spec],
            out_specs=o_spec,
            scratch_shapes=scratch,
            compiler_params=cparams,
        )(xm, wv, wg, bv, bg, w2, b2)
    else:
        w1 = params["w1"].astype(compute_dtype)
        b1 = params["b1"].reshape(1, F).astype(jnp.float32)
        out = pl.pallas_call(
            _ff_gelu_kernel,
            out_shape=out_shape,
            grid=grid,
            in_specs=[x_spec, w1_spec, b1_spec, w2_spec, b2_spec],
            out_specs=o_spec,
            scratch_shapes=scratch,
            compiler_params=cparams,
        )(xm, w1, b1, w2, b2)

    return out.reshape(*orig_shape[:-1], Dout)


# ---------------------------------------------------------------------------
# Parameter init (torch nn.Linear uniform(-1/sqrt(fan_in), 1/sqrt(fan_in)),
# weights stored as (in, out), i.e. transposed w.r.t. torch's (out, in)).
# ---------------------------------------------------------------------------
def init_params(key, dim, dim_out=None, mult=4, glu=False):
    inner = int(dim * mult)
    dim_out = dim_out if dim_out is not None else dim
    ks = jax.random.split(key, 6)

    def u(k, shape, fan_in):
        lim = 1.0 / float(np.sqrt(fan_in))
        return jax.random.uniform(k, shape, jnp.float32, -lim, lim)

    params = {
        "w2": u(ks[4], (inner, dim_out), inner),
        "b2": u(ks[5], (dim_out,), inner),
    }
    if glu:
        # GEGLU.proj is Linear(dim, 2*inner); chunk(2,-1) -> value half, gate half.
        params.update({
            "w1_val": u(ks[0], (dim, inner), dim),
            "w1_gate": u(ks[1], (dim, inner), dim),
            "b1_val": u(ks[2], (inner,), dim),
            "b1_gate": u(ks[3], (inner,), dim),
        })
    else:
        params.update({
            "w1": u(ks[0], (dim, inner), dim),
            "b1": u(ks[1], (inner,), dim),
        })
    return params


# Pure-JAX reference (same bf16 operand rounding / f32 accumulation) for checking.
def reference_forward(params, x, *, glu, compute_dtype=jnp.bfloat16):
    D = x.shape[-1]
    xm = x.reshape(-1, D).astype(compute_dtype)
    if glu:
        val = jnp.dot(xm, params["w1_val"].astype(compute_dtype),
                      preferred_element_type=jnp.float32) + params["b1_val"]
        gate = jnp.dot(xm, params["w1_gate"].astype(compute_dtype),
                       preferred_element_type=jnp.float32) + params["b1_gate"]
        y = val * _gelu_f32(gate)
    else:
        h = jnp.dot(xm, params["w1"].astype(compute_dtype),
                    preferred_element_type=jnp.float32) + params["b1"]
        y = _gelu_f32(h)
    out = jnp.dot(y.astype(compute_dtype), params["w2"].astype(compute_dtype),
                  preferred_element_type=jnp.float32) + params["b2"]
    return out.astype(x.dtype).reshape(*x.shape[:-1], -1)


if __name__ == "__main__":
    # Small, MXU/lane-aligned shapes: 2x128 tokens, dim=128 -> inner=512 -> dim_out=128.
    B, S, D = 2, 128, 128

    key = jax.random.PRNGKey(0)
    k_x, k_p0, k_p1 = jax.random.split(key, 3)
    x = jax.random.normal(k_x, (B, S, D), jnp.float32)

    for glu, k_p in ((False, k_p0), (True, k_p1)):
        params = init_params(k_p, D, glu=glu)
        out = jax.block_until_ready(feed_forward(params, x, glu=glu))
        assert out.shape == (B, S, D), out.shape
        ref = jax.block_until_ready(reference_forward(params, x, glu=glu))
        np.testing.assert_allclose(np.asarray(out), np.asarray(ref),
                                   rtol=1e-2, atol=1e-2)

    print("KERNEL_OK")
</pallas_src>

<mosaic_0001>
module attributes {stable_mosaic.version = 11 : i64} {
  func.func @_ff_gelu_kernel(%arg0: i32, %arg1: i32, %arg2: memref<256x128xbf16, #tpu.memory_space<vmem>>, %arg3: memref<128x512xbf16, #tpu.memory_space<vmem>>, %arg4: memref<1x512xf32, #tpu.memory_space<vmem>>, %arg5: memref<512x128xbf16, #tpu.memory_space<vmem>>, %arg6: memref<1x128xf32, #tpu.memory_space<vmem>>, %arg7: memref<256x128xf32, #tpu.memory_space<vmem>>, %arg8: memref<256x128xf32, #tpu.memory_space<vmem>>) attributes {dimension_semantics = [#tpu.dimension_semantics<parallel>, #tpu.dimension_semantics<arbitrary>], iteration_bounds = array<i64: 1, 1>, scalar_prefetch = 0 : i64, scratch_operands = 1 : i64, tpu.core_type = #tpu.core_type<tc>, window_params = [{transform_indices = @transform_0, window_bounds = array<i64: 256, 128>}, {transform_indices = @transform_1, window_bounds = array<i64: 128, 512>}, {transform_indices = @transform_2, window_bounds = array<i64: 1, 512>}, {transform_indices = @transform_3, window_bounds = array<i64: 512, 128>}, {pipeline_mode = #tpu.pipeline_mode<synchronous>, transform_indices = @transform_4, window_bounds = array<i64: 1, 128>}, {transform_indices = @transform_5, window_bounds = array<i64: 256, 128>}]} {
    %c0_i32 = arith.constant 0 : i32
    %0 = arith.cmpi eq, %arg1, %c0_i32 : i32
    %1 = arith.extui %0 : i1 to i32
    %c0_i32_0 = arith.constant 0 : i32
    %2 = arith.cmpi ne, %1, %c0_i32_0 : i32
    scf.if %2 {
      %cst_19 = arith.constant 0.000000e+00 : f32
      %31 = vector.broadcast %cst_19 : f32 to vector<256x128xf32>
      %c0_20 = arith.constant 0 : index
      %c0_21 = arith.constant 0 : index
      %32 = vector.load %arg8[%c0_20, %c0_21] : memref<256x128xf32, #tpu.memory_space<vmem>>, vector<256x128xf32>
      tpu.vector_store %arg8[%c0_20, %c0_21], %31 {strides = array<i32>} : memref<256x128xf32, #tpu.memory_space<vmem>>, vector<256x128xf32>,
    } else {
    }
    %c0 = arith.constant 0 : index
    %c0_1 = arith.constant 0 : index
    %3 = vector.load %arg2[%c0, %c0_1] : memref<256x128xbf16, #tpu.memory_space<vmem>>, vector<256x128xbf16>
    %c0_2 = arith.constant 0 : index
    %c0_3 = arith.constant 0 : index
    %4 = vector.load %arg3[%c0_2, %c0_3] : memref<128x512xbf16, #tpu.memory_space<vmem>>, vector<128x512xbf16>
    %cst = arith.constant dense<0.000000e+00> : vector<256x512xf32>
    %5 = tpu.matmul %3, %4, %cst {dimension_numbers = #tpu.dot_dimension_numbers<[1], [0], [0], [1], [0, 0, 1, 1], [], []>} : vector<256x128xbf16>, vector<128x512xbf16>, vector<256x512xf32> -> vector<256x512xf32>
    %c0_4 = arith.constant 0 : index
    %c0_5 = arith.constant 0 : index
    %6 = vector.load %arg4[%c0_4, %c0_5] : memref<1x512xf32, #tpu.memory_space<vmem>>, vector<1x512xf32>
    %7 = vector.broadcast %6 : vector<1x512xf32> to vector<256x512xf32>
    %8 = arith.addf %5, %7 : vector<256x512xf32>
    %9 = arith.mulf %8, %8 : vector<256x512xf32>
    %10 = arith.mulf %8, %9 : vector<256x512xf32>
    %cst_6 = arith.constant 4.471500e-02 : f32
    %11 = vector.broadcast %cst_6 : f32 to vector<256x512xf32>
    %12 = arith.mulf %11, %10 : vector<256x512xf32>
    %13 = arith.addf %8, %12 : vector<256x512xf32>
    %cst_7 = arith.constant 0.797884583 : f32
    %14 = vector.broadcast %cst_7 : f32 to vector<256x512xf32>
    %15 = arith.mulf %14, %13 : vector<256x512xf32>
    %16 = math.tanh %15 : vector<256x512xf32>
    %cst_8 = arith.constant 1.000000e+00 : f32
    %17 = vector.broadcast %cst_8 : f32 to vector<256x512xf32>
    %18 = arith.addf %17, %16 : vector<256x512xf32>
    %cst_9 = arith.constant 5.000000e-01 : f32
    %19 = vector.broadcast %cst_9 : f32 to vector<256x512xf32>
    %20 = arith.mulf %19, %18 : vector<256x512xf32>
    %21 = arith.mulf %8, %20 : vector<256x512xf32>
    %22 = arith.truncf %21 : vector<256x512xf32> to vector<256x512xbf16>
    %c0_10 = arith.constant 0 : index
    %c0_11 = arith.constant 0 : index
    %23 = vector.load %arg8[%c0_10, %c0_11] : memref<256x128xf32, #tpu.memory_space<vmem>>, vector<256x128xf32>
    %c0_12 = arith.constant 0 : index
    %c0_13 = arith.constant 0 : index
    %24 = vector.load %arg5[%c0_12, %c0_13] : memref<512x128xbf16, #tpu.memory_space<vmem>>, vector<512x128xbf16>
    %cst_14 = arith.constant dense<0.000000e+00> : vector<256x128xf32>
    %25 = tpu.matmul %22, %24, %cst_14 {dimension_numbers = #tpu.dot_dimension_numbers<[1], [0], [0], [1], [0, 0, 1, 1], [], []>} : vector<256x512xbf16>, vector<512x128xbf16>, vector<256x128xf32> -> vector<256x128xf32>
    %26 = arith.addf %23, %25 : vector<256x128xf32>
    %c0_15 = arith.constant 0 : index
    %c0_16 = arith.constant 0 : index
    %27 = vector.load %arg8[%c0_15, %c0_16] : memref<256x128xf32, #tpu.memory_space<vmem>>, vector<256x128xf32>
    tpu.vector_store %arg8[%c0_15, %c0_16], %26 {strides = array<i32>} : memref<256x128xf32, #tpu.memory_space<vmem>>, vector<256x128xf32>,
    %c0_i32_17 = arith.constant 0 : i32
    %28 = arith.cmpi eq, %arg1, %c0_i32_17 : i32
    %29 = arith.extui %28 : i1 to i32
    %c0_i32_18 = arith.constant 0 : i32
    %30 = arith.cmpi ne, %29, %c0_i32_18 : i32
    scf.if %30 {
      %c0_19 = arith.constant 0 : index
      %c0_20 = arith.constant 0 : index
      %31 = vector.load %arg8[%c0_19, %c0_20] : memref<256x128xf32, #tpu.memory_space<vmem>>, vector<256x128xf32>
      %c0_21 = arith.constant 0 : index
      %c0_22 = arith.constant 0 : index
      %32 = vector.load %arg6[%c0_21, %c0_22] : memref<1x128xf32, #tpu.memory_space<vmem>>, vector<1x128xf32>
      %33 = vector.broadcast %32 : vector<1x128xf32> to vector<256x128xf32>
      %34 = arith.addf %31, %33 : vector<256x128xf32>
      %c0_23 = arith.constant 0 : index
      %c0_24 = arith.constant 0 : index
      %35 = vector.load %arg7[%c0_23, %c0_24] : memref<256x128xf32, #tpu.memory_space<vmem>>, vector<256x128xf32>
      tpu.vector_store %arg7[%c0_23, %c0_24], %34 {strides = array<i32>} : memref<256x128xf32, #tpu.memory_space<vmem>>, vector<256x128xf32>,
    } else {
    }
    return
  }
  func.func @transform_0(%arg0: i32, %arg1: i32) -> (i32, i32) {
    %c0_i32 = arith.constant 0 : i32
    %c0_i32_0 = arith.constant 0 : i32
    return %arg0, %c0_i32 : i32, i32
  }
  func.func @transform_1(%arg0: i32, %arg1: i32) -> (i32, i32) {
    %c0_i32 = arith.constant 0 : i32
    %c0_i32_0 = arith.constant 0 : i32
    return %c0_i32, %arg1 : i32, i32
  }
  func.func @transform_2(%arg0: i32, %arg1: i32) -> (i32, i32) {
    %c0_i32 = arith.constant 0 : i32
    %c0_i32_0 = arith.constant 0 : i32
    return %c0_i32, %arg1 : i32, i32
  }
  func.func @transform_3(%arg0: i32, %arg1: i32) -> (i32, i32) {
    %c0_i32 = arith.constant 0 : i32
    %c0_i32_0 = arith.constant 0 : i32
    return %arg1, %c0_i32 : i32, i32
  }
  func.func @transform_4(%arg0: i32, %arg1: i32) -> (i32, i32) {
    %c0_i32 = arith.constant 0 : i32
    %c0_i32_0 = arith.constant 0 : i32
    %c0_i32_1 = arith.constant 0 : i32
    return %c0_i32, %c0_i32_0 : i32, i32
  }
  func.func @transform_5(%arg0: i32, %arg1: i32) -> (i32, i32) {
    %c0_i32 = arith.constant 0 : i32
    %c0_i32_0 = arith.constant 0 : i32
    return %arg0, %c0_i32 : i32, i32
  }
}

</mosaic_0001>

<llo_original>
// kernel: tpu_custom_call.1
$region0: #{tpu_custom_call.1}
  #allocation0 [shape = 'u32[]', space=smem, size = 0x4, offset = 0x4, fixed_abs, tag = 'smem constant byte address 0x4 - core index']
  #allocation1 [shape = 'u32[144,128]{1,0:T(1,128)}', space=vmem, size = 0x12000, scoped, tag = 'internal scratch']
  #allocation2 [shape = 'f32[256,128]{1,0:T(8,128)}', space=vmem, size = 0x20000, scoped, tag = 'scratch operand']
  %s0 = inlined_call_operand.hbm [shape: bf16[256,128], index: 0, kind: input, shape index: {}]
  %s1 = inlined_call_operand.hbm [shape: bf16[128,512], index: 1, kind: input, shape index: {}]
  %s2 = inlined_call_operand.vmem [shape: f32[1,512], index: 2, kind: input, shape index: {}]
  %s3 = inlined_call_operand.hbm [shape: bf16[512,128], index: 3, kind: input, shape index: {}]
  %s4 = inlined_call_operand.vmem [shape: f32[1,128], index: 4, kind: input, shape index: {}]
  %s5 = inlined_call_operand.hbm [shape: f32[256,128], index: 5, kind: output, shape index: {}]
  %s6 = sld [smem:[#allocation0]]
  $region50: #{tpu_custom_call.1} parent=0
    _
  %s8 = ssub.s32 1, %s6
  %s9 = scalar_select 0, %s8, %s6
  $region1: #{tpu_custom_call.1} parent=0
    #allocation3 [shape = 'u8[65536]{0}', space=vmem, size = 0x10000, scoped, tag = 'input window, operand 0, single buffered']
    #allocation4 [shape = 's32[1]{0}', space=sflag, size = 0x4, scoped, tag = 'scoped memory for tpu_custom_call.1']
    #allocation5 [shape = 's32[1]{0}', space=sflag, size = 0x4, scoped, tag = 'scoped memory for tpu_custom_call.1']
    #allocation6 [shape = 'u8[131072]{0}', space=vmem, size = 0x20000, scoped, tag = 'input window, operand 1, single buffered']
    #allocation7 [shape = 's32[1]{0}', space=sflag, size = 0x4, scoped, tag = 'scoped memory for tpu_custom_call.1']
    #allocation8 [shape = 'u8[131072]{0}', space=vmem, size = 0x20000, scoped, tag = 'input window, operand 3, single buffered']
    #allocation9 [shape = 'u8[131072]{0}', space=vmem, size = 0x20000, scoped, tag = 'output window, operand 0, single buffered']
    %10 = vsyncpa [#allocation4], 0
    %11 = vsyncpa [#allocation7], 0
    %12 = vsyncpa [#allocation5], 0
    // Predicated region
    $region2: #{tpu_custom_call.1} parent=1 // pred_check
      _
    $region3: #{tpu_custom_call.1} parent=1 // pred_check_branch
      %14 = sbr.rel (0) target = $region5
    $region4: #{tpu_custom_call.1} parent=1 // pred_region
      %s16 = ssub.s32 2048, 2048
      %17 = vsyncadd [#allocation4], %s16
      %s18 = sshll.u32 [#allocation3], 4
      %s19 = int_to_ptr.vmem [resolvable:$true] %s18
      %24 = dma.hbm_to_vmem [thread:$0]  %s0, 2048, %s19, [#allocation4], 64, 64, 4
    $region5: #{tpu_custom_call.1} parent=1 // pred_fallthru
      _
    // Predicated region
    $region6: #{tpu_custom_call.1} parent=1 // pred_check
      _
    $region7: #{tpu_custom_call.1} parent=1 // pred_check_branch
      %26 = sbr.rel (0) target = $region9
    $region8: #{tpu_custom_call.1} parent=1 // pred_region
      %s28 = ssub.s32 4096, 4096
      %29 = vsyncadd [#allocation7], %s28
      %s30 = sshll.u32 [#allocation6], 4
      %s31 = int_to_ptr.vmem [resolvable:$true] %s30
      %36 = dma.hbm_to_vmem [thread:$0]  %s1, 4096, %s31, [#allocation7], 256, 256, 16
    $region9: #{tpu_custom_call.1} parent=1 // pred_fallthru
      _
    // Predicated region
    $region10: #{tpu_custom_call.1} parent=1 // pred_check
      _
    $region11: #{tpu_custom_call.1} parent=1 // pred_check_branch
      %38 = sbr.rel (0) target = $region13
    $region12: #{tpu_custom_call.1} parent=1 // pred_region
      _
    $region13: #{tpu_custom_call.1} parent=1 // pred_fallthru
      _
    // Predicated region
    $region14: #{tpu_custom_call.1} parent=1 // pred_check
      _
    $region15: #{tpu_custom_call.1} parent=1 // pred_check_branch
      %40 = sbr.rel (0) target = $region17
    $region16: #{tpu_custom_call.1} parent=1 // pred_region
      %s42 = ssub.s32 4096, 4096
      %43 = vsyncadd [#allocation7], %s42
      %s44 = sshll.u32 [#allocation8], 4
      %s45 = int_to_ptr.vmem [resolvable:$true] %s44
      %50 = dma.hbm_to_vmem [thread:$0]  %s3, 4096, %s45, [#allocation7], 64, 64, 4
    $region17: #{tpu_custom_call.1} parent=1 // pred_fallthru
      _
    // Predicated region
    $region18: #{tpu_custom_call.1} parent=1 // pred_check
      _
    $region19: #{tpu_custom_call.1} parent=1 // pred_check_branch
      %52 = sbr.rel (0) target = $region21
    $region20: #{tpu_custom_call.1} parent=1 // pred_region
      _
    $region21: #{tpu_custom_call.1} parent=1 // pred_fallthru
      _
    // Predicated region
    $region22: #{tpu_custom_call.1} parent=1 // pred_check
      _
    $region23: #{tpu_custom_call.1} parent=1 // pred_check_branch
      %54 = sbr.rel (0) target = $region25
    $region24: #{tpu_custom_call.1} parent=1 // pred_region
      %55 = dma.done [#allocation4], 2048
    $region25: #{tpu_custom_call.1} parent=1 // pred_fallthru
      _
    // Predicated region
    $region26: #{tpu_custom_call.1} parent=1 // pred_check
      _
    $region27: #{tpu_custom_call.1} parent=1 // pred_check_branch
      %57 = sbr.rel (0) target = $region29
    $region28: #{tpu_custom_call.1} parent=1 // pred_region
      %58 = dma.done [#allocation7], 4096
    $region29: #{tpu_custom_call.1} parent=1 // pred_fallthru
      _
    // Predicated region
    $region30: #{tpu_custom_call.1} parent=1 // pred_check
      _
    $region31: #{tpu_custom_call.1} parent=1 // pred_check_branch
      %60 = sbr.rel (0) target = $region33
    $region32: #{tpu_custom_call.1} parent=1 // pred_region
      %61 = dma.done [#allocation7], 4096
    $region33: #{tpu_custom_call.1} parent=1 // pred_fallthru
      _
    %p63 = scmp.eq.s32.totalorder 0, 0
    // Predicated region
    $region34: #{tpu_custom_call.1} parent=1 // pred_check
      %p64 = pneg %p63
    $region35: #{tpu_custom_call.1} parent=1 // pred_check_branch
      %66 = sbr.rel (%p64) target = $region37
    $region36: #{tpu_custom_call.1} parent=1 // pred_region
      %67 = vst [vmem:[#allocation2] sm:$0xff] 0.0
      %68 = vst [vmem:[#allocation2 + $0x8] sm:$0xff] 0.0
      %69 = vst [vmem:[#allocation2 + $0x10] sm:$0xff] 0.0
      %70 = vst [vmem:[#allocation2 + $0x18] sm:$0xff] 0.0
      %71 = vst [vmem:[#allocation2 + $0x20] sm:$0xff] 0.0
      %72 = vst [vmem:[#allocation2 + $0x28] sm:$0xff] 0.0
      %73 = vst [vmem:[#allocation2 + $0x30] sm:$0xff] 0.0
      %74 = vst [vmem:[#allocation2 + $0x38] sm:$0xff] 0.0
      %75 = vst [vmem:[#allocation2 + $0x40] sm:$0xff] 0.0
      %76 = vst [vmem:[#allocation2 + $0x48] sm:$0xff] 0.0
      %77 = vst [vmem:[#allocation2 + $0x50] sm:$0xff] 0.0
      %78 = vst [vmem:[#allocation2 + $0x58] sm:$0xff] 0.0
      %79 = vst [vmem:[#allocation2 + $0x60] sm:$0xff] 0.0
      %80 = vst [vmem:[#allocation2 + $0x68] sm:$0xff] 0.0
      %81 = vst [vmem:[#allocation2 + $0x70] sm:$0xff] 0.0
      %82 = vst [vmem:[#allocation2 + $0x78] sm:$0xff] 0.0
      %83 = vst [vmem:[#allocation2 + $0x80] sm:$0xff] 0.0
      %84 = vst [vmem:[#allocation2 + $0x88] sm:$0xff] 0.0
      %85 = vst [vmem:[#allocation2 + $0x90] sm:$0xff] 0.0
      %86 = vst [vmem:[#allocation2 + $0x98] sm:$0xff] 0.0
      %87 = vst [vmem:[#allocation2 + $0xa0] sm:$0xff] 0.0
      %88 = vst [vmem:[#allocation2 + $0xa8] sm:$0xff] 0.0
      %89 = vst [vmem:[#allocation2 + $0xb0] sm:$0xff] 0.0
      %90 = vst [vmem:[#allocation2 + $0xb8] sm:$0xff] 0.0
      %91 = vst [vmem:[#allocation2 + $0xc0] sm:$0xff] 0.0
      %92 = vst [vmem:[#allocation2 + $0xc8] sm:$0xff] 0.0
      %93 = vst [vmem:[#allocation2 + $0xd0] sm:$0xff] 0.0
      %94 = vst [vmem:[#allocation2 + $0xd8] sm:$0xff] 0.0
      %95 = vst [vmem:[#allocation2 + $0xe0] sm:$0xff] 0.0
      %96 = vst [vmem:[#allocation2 + $0xe8] sm:$0xff] 0.0
      %97 = vst [vmem:[#allocation2 + $0xf0] sm:$0xff] 0.0
      %98 = vst [vmem:[#allocation2 + $0xf8] sm:$0xff] 0.0
    $region37: #{tpu_custom_call.1} parent=1 // pred_fallthru
      _
    %v99 = vld [vmem:[#allocation3] sm:$0xf]
    %v100 = vld [vmem:[#allocation3 + $0x4] sm:$0xf]
    %v101 = vld [vmem:[#allocation3 + $0x8] sm:$0xf]
    %v102 = vld [vmem:[#allocation3 + $0xc] sm:$0xf]
    %v103 = vld [vmem:[#allocation3 + $0x10] sm:$0xf]
    %v104 = vld [vmem:[#allocation3 + $0x14] sm:$0xf]
    %v105 = vld [vmem:[#allocation3 + $0x18] sm:$0xf]
    %v106 = vld [vmem:[#allocation3 + $0x1c] sm:$0xf]
    %v107 = vld [vmem:[#allocation3 + $0x20] sm:$0xf]
    %v108 = vld [vmem:[#allocation3 + $0x24] sm:$0xf]
    %v109 = vld [vmem:[#allocation3 + $0x28] sm:$0xf]
    %v110 = vld [vmem:[#allocation3 + $0x2c] sm:$0xf]
    %v111 = vld [vmem:[#allocation3 + $0x30] sm:$0xf]
    %v112 = vld [vmem:[#allocation3 + $0x34] sm:$0xf]
    %v113 = vld [vmem:[#allocation3 + $0x38] sm:$0xf]
    %v114 = vld [vmem:[#allocation3 + $0x3c] sm:$0xf]
    %v115 = vld [vmem:[#allocation3 + $0x40] sm:$0xf]
    %v116 = vld [vmem:[#allocation3 + $0x44] sm:$0xf]
    %v117 = vld [vmem:[#allocation3 + $0x48] sm:$0xf]
    %v118 = vld [vmem:[#allocation3 + $0x4c] sm:$0xf]
    %v119 = vld [vmem:[#allocation3 + $0x50] sm:$0xf]
    %v120 = vld [vmem:[#allocation3 + $0x54] sm:$0xf]
    %v121 = vld [vmem:[#allocation3 + $0x58] sm:$0xf]
    %v122 = vld [vmem:[#allocation3 + $0x5c] sm:$0xf]
    %v123 = vld [vmem:[#allocation3 + $0x60] sm:$0xf]
    %v124 = vld [vmem:[#allocation3 + $0x64] sm:$0xf]
    %v125 = vld [vmem:[#allocation3 + $0x68] sm:$0xf]
    %v126 = vld [vmem:[#allocation3 + $0x6c] sm:$0xf]
    %v127 = vld [vmem:[#allocation3 + $0x70] sm:$0xf]
    %v128 = vld [vmem:[#allocation3 + $0x74] sm:$0xf]
    %v129 = vld [vmem:[#allocation3 + $0x78] sm:$0xf]
    %v130 = vld [vmem:[#allocation3 + $0x7c] sm:$0xf]
    %v131 = vld [vmem:[#allocation6] sm:$0xff]
    %v132 = vld [vmem:[#allocation6 + $0x8] sm:$0xff]
    %v133 = vld [vmem:[#allocation6 + $0x10] sm:$0xff]
    %v134 = vld [vmem:[#allocation6 + $0x18] sm:$0xff]
    %v135 = vld [vmem:[#allocation6 + $0x20] sm:$0xff]
    %v136 = vld [vmem:[#allocation6 + $0x28] sm:$0xff]
    %v137 = vld [vmem:[#allocation6 + $0x30] sm:$0xff]
    %v138 = vld [vmem:[#allocation6 + $0x38] sm:$0xff]
    %v139 = vld [vmem:[#allocation6 + $0x40] sm:$0xff]
    %v140 = vld [vmem:[#allocation6 + $0x48] sm:$0xff]
    %v141 = vld [vmem:[#allocation6 + $0x50] sm:$0xff]
    %v142 = vld [vmem:[#allocation6 + $0x58] sm:$0xff]
    %v143 = vld [vmem:[#allocation6 + $0x60] sm:$0xff]
    %v144 = vld [vmem:[#allocation6 + $0x68] sm:$0xff]
    %v145 = vld [vmem:[#allocation6 + $0x70] sm:$0xff]
    %v146 = vld [vmem:[#allocation6 + $0x78] sm:$0xff]
    %v147 = vld [vmem:[#allocation6 + $0x80] sm:$0xff]
    %v148 = vld [vmem:[#allocation6 + $0x88] sm:$0xff]
    %v149 = vld [vmem:[#allocation6 + $0x90] sm:$0xff]
    %v150 = vld [vmem:[#allocation6 + $0x98] sm:$0xff]
    %v151 = vld [vmem:[#allocation6 + $0xa0] sm:$0xff]
    %v152 = vld [vmem:[#allocation6 + $0xa8] sm:$0xff]
    %v153 = vld [vmem:[#allocation6 + $0xb0] sm:$0xff]
    %v154 = vld [vmem:[#allocation6 + $0xb8] sm:$0xff]
    %v155 = vld [vmem:[#allocation6 + $0xc0] sm:$0xff]
    %v156 = vld [vmem:[#allocation6 + $0xc8] sm:$0xff]
    %v157 = vld [vmem:[#allocation6 + $0xd0] sm:$0xff]
    %v158 = vld [vmem:[#allocation6 + $0xd8] sm:$0xff]
    %v159 = vld [vmem:[#allocation6 + $0xe0] sm:$0xff]
    %v160 = vld [vmem:[#allocation6 + $0xe8] sm:$0xff]
    %v161 = vld [vmem:[#allocation6 + $0xf0] sm:$0xff]
    %v162 = vld [vmem:[#allocation6 + $0xf8] sm:$0xff]
    %v163 = vld [vmem:[%s2] sm:$0xf]
    %v165 = vlaneseq
    %v166 = vshrl.u32 %v165, 7
    %v167 = vsub.s32 0, %v166
    %v168 = vrot.slane %v163, %v167
    %v169 = vlaneseq
    %v170 = vshrl.u32 %v169, 7
    %v171 = vsub.s32 1, %v170
    %v172 = vrot.slane %v163, %v171
    %v173 = vlaneseq
    %v174 = vshrl.u32 %v173, 7
    %v175 = vsub.s32 2, %v174
    %v176 = vrot.slane %v163, %v175
    %v177 = vlaneseq
    %v178 = vshrl.u32 %v177, 7
    %v179 = vsub.s32 3, %v178
    %v180 = vrot.slane %v163, %v179
    %v217 = vunpack.c.l.b16 %v99
    %v218 = vunpack.c.l.b16 %v100
    %v219 = vunpack.c.l.b16 %v101
    %v220 = vunpack.c.l.b16 %v102
    %v221 = vunpack.c.l.b16 %v103
    %v222 = vunpack.c.l.b16 %v104
    %v223 = vunpack.c.l.b16 %v105
    %v224 = vunpack.c.l.b16 %v106
    %v225 = vunpack.c.l.b16 %v107
    %v226 = vunpack.c.l.b16 %v108
    %v227 = vunpack.c.l.b16 %v109
    %v228 = vunpack.c.l.b16 %v110
    %v229 = vunpack.c.l.b16 %v111
    %v230 = vunpack.c.l.b16 %v112
    %v231 = vunpack.c.l.b16 %v113
    %v232 = vunpack.c.l.b16 %v114
    %v233 = vunpack.c.l.b16 %v115
    %v234 = vunpack.c.l.b16 %v116
    %v235 = vunpack.c.l.b16 %v117
    %v236 = vunpack.c.l.b16 %v118
    %v237 = vunpack.c.l.b16 %v119
    %v238 = vunpack.c.l.b16 %v120
    %v239 = vunpack.c.l.b16 %v121
    %v240 = vunpack.c.l.b16 %v122
    %v241 = vunpack.c.l.b16 %v123
    %v242 = vunpack.c.l.b16 %v124
    %v243 = vunpack.c.l.b16 %v125
    %v244 = vunpack.c.l.b16 %v126
    %v245 = vunpack.c.l.b16 %v127
    %v246 = vunpack.c.l.b16 %v128
    %v247 = vunpack.c.l.b16 %v129
    %v248 = vunpack.c.l.b16 %v130
    %v249 = vpack.c.b16 %v218, %v217
    %v250 = vpack.c.b16 %v220, %v219
    %v251 = vpack.c.b16 %v222, %v221
    %v252 = vpack.c.b16 %v224, %v223
    %v253 = vpack.c.b16 %v226, %v225
    %v254 = vpack.c.b16 %v228, %v227
    %v255 = vpack.c.b16 %v230, %v229
    %v256 = vpack.c.b16 %v232, %v231
    %v257 = vpack.c.b16 %v234, %v233
    %v258 = vpack.c.b16 %v236, %v235
    %v259 = vpack.c.b16 %v238, %v237
    %v260 = vpack.c.b16 %v240, %v239
    %v261 = vpack.c.b16 %v242, %v241
    %v262 = vpack.c.b16 %v244, %v243
    %v263 = vpack.c.b16 %v246, %v245
    %v264 = vpack.c.b16 %v248, %v247
    %v313 = vunpack.c.l.b16 %v131
    %v314 = vunpack.c.h.b16 %v131
    %v315 = vunpack.c.l.b16 %v132
    %v316 = vunpack.c.h.b16 %v132
    %v317 = vunpack.c.l.b16 %v133
    %v318 = vunpack.c.h.b16 %v133
    %v319 = vunpack.c.l.b16 %v134
    %v320 = vunpack.c.h.b16 %v134
    %v321 = vunpack.c.l.b16 %v135
    %v322 = vunpack.c.h.b16 %v135
    %v323 = vunpack.c.l.b16 %v136
    %v324 = vunpack.c.h.b16 %v136
    %v325 = vunpack.c.l.b16 %v137
    %v326 = vunpack.c.h.b16 %v137
    %v327 = vunpack.c.l.b16 %v138
    %v328 = vunpack.c.h.b16 %v138
    %v329 = vunpack.c.l.b16 %v139
    %v330 = vunpack.c.h.b16 %v139
    %v331 = vunpack.c.l.b16 %v140
    %v332 = vunpack.c.h.b16 %v140
    %v333 = vunpack.c.l.b16 %v141
    %v334 = vunpack.c.h.b16 %v141
    %v335 = vunpack.c.l.b16 %v142
    %v336 = vunpack.c.h.b16 %v142
    %v337 = vunpack.c.l.b16 %v143
    %v338 = vunpack.c.h.b16 %v143
    %v339 = vunpack.c.l.b16 %v144
    %v340 = vunpack.c.h.b16 %v144
    %v341 = vunpack.c.l.b16 %v145
    %v342 = vunpack.c.h.b16 %v145
    %v343 = vunpack.c.l.b16 %v146
    %v344 = vunpack.c.h.b16 %v146
    %v345 = vunpack.c.l.b16 %v147
    %v346 = vunpack.c.h.b16 %v147
    %v347 = vunpack.c.l.b16 %v148
    %v348 = vunpack.c.h.b16 %v148
    %v349 = vunpack.c.l.b16 %v149
    %v350 = vunpack.c.h.b16 %v149
    %v351 = vunpack.c.l.b16 %v150
    %v352 = vunpack.c.h.b16 %v150
    %v353 = vunpack.c.l.b16 %v151
    %v354 = vunpack.c.h.b16 %v151
    %v355 = vunpack.c.l.b16 %v152
    %v356 = vunpack.c.h.b16 %v152
    %v357 = vunpack.c.l.b16 %v153
    %v358 = vunpack.c.h.b16 %v153
    %v359 = vunpack.c.l.b16 %v154
    %v360 = vunpack.c.h.b16 %v154
    %v361 = vunpack.c.l.b16 %v155
    %v362 = vunpack.c.h.b16 %v155
    %v363 = vunpack.c.l.b16 %v156
    %v364 = vunpack.c.h.b16 %v156
    %v365 = vunpack.c.l.b16 %v157
    %v366 = vunpack.c.h.b16 %v157
    %v367 = vunpack.c.l.b16 %v158
    %v368 = vunpack.c.h.b16 %v158
    %v369 = vunpack.c.l.b16 %v159
    %v370 = vunpack.c.h.b16 %v159
    %v371 = vunpack.c.l.b16 %v160
    %v372 = vunpack.c.h.b16 %v160
    %v373 = vunpack.c.l.b16 %v161
    %v374 = vunpack.c.h.b16 %v161
    %v375 = vunpack.c.l.b16 %v162
    %v376 = vunpack.c.h.b16 %v162
    %v377 = vpack.c.b16 %v317, %v313
    %v378 = vpack.c.b16 %v318, %v314
    %v379 = vpack.c.b16 %v319, %v315
    %v380 = vpack.c.b16 %v320, %v316
    %v381 = vpack.c.b16 %v325, %v321
    %v382 = vpack.c.b16 %v326, %v322
    %v383 = vpack.c.b16 %v327, %v323
    %v384 = vpack.c.b16 %v328, %v324
    %v385 = vpack.c.b16 %v333, %v329
    %v386 = vpack.c.b16 %v334, %v330
    %v387 = vpack.c.b16 %v335, %v331
    %v388 = vpack.c.b16 %v336, %v332
    %v389 = vpack.c.b16 %v341, %v337
    %v390 = vpack.c.b16 %v342, %v338
    %v391 = vpack.c.b16 %v343, %v339
    %v392 = vpack.c.b16 %v344, %v340
    %v393 = vpack.c.b16 %v349, %v345
    %v394 = vpack.c.b16 %v350, %v346
    %v395 = vpack.c.b16 %v351, %v347
    %v396 = vpack.c.b16 %v352, %v348
    %v397 = vpack.c.b16 %v357, %v353
    %v398 = vpack.c.b16 %v358, %v354
    %v399 = vpack.c.b16 %v359, %v355
    %v400 = vpack.c.b16 %v360, %v356
    %v401 = vpack.c.b16 %v365, %v361
    %v402 = vpack.c.b16 %v366, %v362
    %v403 = vpack.c.b16 %v367, %v363
    %v404 = vpack.c.b16 %v368, %v364
    %v405 = vpack.c.b16 %v373, %v369
    %v406 = vpack.c.b16 %v374, %v370
    %v407 = vpack.c.b16 %v375, %v371
    %v408 = vpack.c.b16 %v376, %v372
    %441 = vmatprep.subr.bf16.mxu0 %v378
    %442 = vmatpush1.bf16.msra.mxu0 %v377
    %443 = vmatprep.subr.bf16.mxu0 %v382
    %444 = vmatpush1.bf16.msra.mxu0 %v381
    %445 = vmatprep.subr.bf16.mxu0 %v386
    %446 = vmatpush1.bf16.msra.mxu0 %v385
    %447 = vmatprep.subr.bf16.mxu0 %v390
    %448 = vmatpush1.bf16.msra.mxu0 %v389
    %449 = vmatprep.subr.bf16.mxu0 %v394
    %450 = vmatpush1.bf16.msra.mxu0 %v393
    %451 = vmatprep.subr.bf16.mxu0 %v398
    %452 = vmatpush1.bf16.msra.mxu0 %v397
    %453 = vmatprep.subr.bf16.mxu0 %v402
    %454 = vmatpush1.bf16.msra.mxu0 %v401
    %455 = vmatprep.subr.bf16.mxu0 %v406
    %456 = vmatpush1.bf16.msra.mxu0 %v405
    %457 = vmatprep.subr.bf16.mxu0 0
    %458 = vmatpush1.bf16.msra.mxu0 0
    %459 = vmatprep.subr.bf16.mxu0 0
    %460 = vmatpush1.bf16.msra.mxu0 0
    %461 = vmatprep.subr.bf16.mxu0 0
    %462 = vmatpush1.bf16.msra.mxu0 0
    %463 = vmatprep.subr.bf16.mxu0 0
    %464 = vmatpush1.bf16.msra.mxu0 0
    %465 = vmatprep.subr.bf16.mxu0 0
    %466 = vmatpush1.bf16.msra.mxu0 0
    %467 = vmatprep.subr.bf16.mxu0 0
    %468 = vmatpush1.bf16.msra.mxu0 0
    %469 = vmatprep.subr.bf16.mxu0 0
    %470 = vmatpush1.bf16.msra.mxu0 0
    %471 = vmatprep.subr.bf16.mxu0 0
    %472 = vmatpush1.bf16.msra.mxu0 0
    %473 = vmatprep.mubr.bf16.mxu0 0
    %474 = vmatmul.mubr.bf16.gmra.mrb[0].mxu0 %v249
    %v475 = vpop.f32.mrb[0].mxu0
    %v476 = vadd.f32 %v168, %v475
    %v477 = vpop.f32.mrb[0].mxu0
    %v478 = vadd.f32 %v172, %v477
    %v479 = vpop.f32.mrb[0].mxu0
    %v480 = vadd.f32 %v168, %v479
    %v481 = vpop.f32.mrb[0].mxu0
    %v482 = vadd.f32 %v172, %v481
    %483 = vmatprep.mubr.bf16.mxu0 0
    %484 = vmatmul.mubr.bf16.gmra.mrb[0].mxu0 %v250
    %v485 = vpop.f32.mrb[0].mxu0
    %v486 = vadd.f32 %v168, %v485
    %v487 = vpop.f32.mrb[0].mxu0
    %v488 = vadd.f32 %v172, %v487
    %v489 = vpop.f32.mrb[0].mxu0
    %v490 = vadd.f32 %v168, %v489
    %v491 = vpop.f32.mrb[0].mxu0
    %v492 = vadd.f32 %v172, %v491
    %493 = vmatprep.mubr.bf16.mxu0 0
    %494 = vmatmul.mubr.bf16.gmra.mrb[0].mxu0 %v251
    %v495 = vpop.f32.mrb[0].mxu0
    %v496 = vadd.f32 %v168, %v495
    %v497 = vpop.f32.mrb[0].mxu0
    %v498 = vadd.f32 %v172, %v497
    %v499 = vpop.f32.mrb[0].mxu0
    %v500 = vadd.f32 %v168, %v499
    %v501 = vpop.f32.mrb[0].mxu0
    %v502 = vadd.f32 %v172, %v501
    %503 = vmatprep.mubr.bf16.mxu0 0
    %504 = vmatmul.mubr.bf16.gmra.mrb[0].mxu0 %v252
    %v505 = vpop.f32.mrb[0].mxu0
    %v506 = vadd.f32 %v168, %v505
    %v507 = vpop.f32.mrb[0].mxu0
    %v508 = vadd.f32 %v172, %v507
    %v509 = vpop.f32.mrb[0].mxu0
    %v510 = vadd.f32 %v168, %v509
    %v511 = vpop.f32.mrb[0].mxu0
    %v512 = vadd.f32 %v172, %v511
    %513 = vmatprep.mubr.bf16.mxu0 0
    %514 = vmatmul.mubr.bf16.gmra.mrb[0].mxu0 %v253
    %v515 = vpop.f32.mrb[0].mxu0
    %v516 = vadd.f32 %v168, %v515
    %v517 = vpop.f32.mrb[0].mxu0
    %v518 = vadd.f32 %v172, %v517
    %v519 = vpop.f32.mrb[0].mxu0
    %v520 = vadd.f32 %v168, %v519
    %v521 = vpop.f32.mrb[0].mxu0
    %v522 = vadd.f32 %v172, %v521
    %523 = vmatprep.mubr.bf16.mxu0 0
    %524 = vmatmul.mubr.bf16.gmra.mrb[0].mxu0 %v254
    %v525 = vpop.f32.mrb[0].mxu0
    %v526 = vadd.f32 %v168, %v525
    %v527 = vpop.f32.mrb[0].mxu0
    %v528 = vadd.f32 %v172, %v527
    %v529 = vpop.f32.mrb[0].mxu0
    %v530 = vadd.f32 %v168, %v529
    %v531 = vpop.f32.mrb[0].mxu0
    %v532 = vadd.f32 %v172, %v531
    %533 = vmatprep.mubr.bf16.mxu0 0
    %534 = vmatmul.mubr.bf16.gmra.mrb[0].mxu0 %v255
    %v535 = vpop.f32.mrb[0].mxu0
    %v536 = vadd.f32 %v168, %v535
    %v537 = vpop.f32.mrb[0].mxu0
    %v538 = vadd.f32 %v172, %v537
    %v539 = vpop.f32.mrb[0].mxu0
    %v540 = vadd.f32 %v168, %v539
    %v541 = vpop.f32.mrb[0].mxu0
    %v542 = vadd.f32 %v172, %v541
    %543 = vmatprep.mubr.bf16.mxu0 0
    %544 = vmatmul.mubr.bf16.gmra.mrb[0].mxu0 %v256
    %v545 = vpop.f32.mrb[0].mxu0
    %v546 = vadd.f32 %v168, %v545
    %v547 = vpop.f32.mrb[0].mxu0
    %v548 = vadd.f32 %v172, %v547
    %v549 = vpop.f32.mrb[0].mxu0
    %v550 = vadd.f32 %v168, %v549
    %v551 = vpop.f32.mrb[0].mxu0
    %v552 = vadd.f32 %v172, %v551
    %553 = vmatprep.mubr.bf16.mxu0 0
    %554 = vmatmul.mubr.bf16.gmra.mrb[0].mxu0 %v257
    %v555 = vpop.f32.mrb[0].mxu0
    %v556 = vadd.f32 %v168, %v555
    %v557 = vpop.f32.mrb[0].mxu0
    %v558 = vadd.f32 %v172, %v557
    %v559 = vpop.f32.mrb[0].mxu0
    %v560 = vadd.f32 %v168, %v559
    %v561 = vpop.f32.mrb[0].mxu0
    %v562 = vadd.f32 %v172, %v561
    %563 = vmatprep.mubr.bf16.mxu0 0
    %564 = vmatmul.mubr.bf16.gmra.mrb[0].mxu0 %v258
    %v565 = vpop.f32.mrb[0].mxu0
    %v566 = vadd.f32 %v168, %v565
    %v567 = vpop.f32.mrb[0].mxu0
    %v568 = vadd.f32 %v172, %v567
    %v569 = vpop.f32.mrb[0].mxu0
    %v570 = vadd.f32 %v168, %v569
    %v571 = vpop.f32.mrb[0].mxu0
    %v572 = vadd.f32 %v172, %v571
    %573 = vmatprep.mubr.bf16.mxu0 0
    %574 = vmatmul.mubr.bf16.gmra.mrb[0].mxu0 %v259
    %v575 = vpop.f32.mrb[0].mxu0
    %v576 = vadd.f32 %v168, %v575
    %v577 = vpop.f32.mrb[0].mxu0
    %v578 = vadd.f32 %v172, %v577
    %v579 = vpop.f32.mrb[0].mxu0
    %v580 = vadd.f32 %v168, %v579
    %v581 = vpop.f32.mrb[0].mxu0
    %v582 = vadd.f32 %v172, %v581
    %583 = vmatprep.mubr.bf16.mxu0 0
    %584 = vmatmul.mubr.bf16.gmra.mrb[0].mxu0 %v260
    %v585 = vpop.f32.mrb[0].mxu0
    %v586 = vadd.f32 %v168, %v585
    %v587 = vpop.f32.mrb[0].mxu0
    %v588 = vadd.f32 %v172, %v587
    %v589 = vpop.f32.mrb[0].mxu0
    %v590 = vadd.f32 %v168, %v589
    %v591 = vpop.f32.mrb[0].mxu0
    %v592 = vadd.f32 %v172, %v591
    %593 = vmatprep.mubr.bf16.mxu0 0
    %594 = vmatmul.mubr.bf16.gmra.mrb[0].mxu0 %v261
    %v595 = vpop.f32.mrb[0].mxu0
    %v596 = vadd.f32 %v168, %v595
    %v597 = vpop.f32.mrb[0].mxu0
    %v598 = vadd.f32 %v172, %v597
    %v599 = vpop.f32.mrb[0].mxu0
    %v600 = vadd.f32 %v168, %v599
    %v601 = vpop.f32.mrb[0].mxu0
    %v602 = vadd.f32 %v172, %v601
    %603 = vmatprep.mubr.bf16.mxu0 0
    %604 = vmatmul.mubr.bf16.gmra.mrb[0].mxu0 %v262
    %v605 = vpop.f32.mrb[0].mxu0
    %v606 = vadd.f32 %v168, %v605
    %v607 = vpop.f32.mrb[0].mxu0
    %v608 = vadd.f32 %v172, %v607
    %v609 = vpop.f32.mrb[0].mxu0
    %v610 = vadd.f32 %v168, %v609
    %v611 = vpop.f32.mrb[0].mxu0
    %v612 = vadd.f32 %v172, %v611
    %613 = vmatprep.mubr.bf16.mxu0 0
    %614 = vmatmul.mubr.bf16.gmra.mrb[0].mxu0 %v263
    %v615 = vpop.f32.mrb[0].mxu0
    %v616 = vadd.f32 %v168, %v615
    %v617 = vpop.f32.mrb[0].mxu0
    %v618 = vadd.f32 %v172, %v617
    %v619 = vpop.f32.mrb[0].mxu0
    %v620 = vadd.f32 %v168, %v619
    %v621 = vpop.f32.mrb[0].mxu0
    %v622 = vadd.f32 %v172, %v621
    %623 = vmatprep.mubr.bf16.mxu0 0
    %624 = vmatmul.mubr.bf16.gmra.mrb[0].mxu0 %v264
    %v625 = vpop.f32.mrb[0].mxu0
    %v626 = vadd.f32 %v168, %v625
    %v627 = vpop.f32.mrb[0].mxu0
    %v628 = vadd.f32 %v172, %v627
    %v629 = vpop.f32.mrb[0].mxu0
    %v630 = vadd.f32 %v168, %v629
    %v631 = vpop.f32.mrb[0].mxu0
    %v632 = vadd.f32 %v172, %v631
    %633 = vdwg.mxu0
    %634 = vmatprep.subr.bf16.mxu0 %v380
    %635 = vmatpush1.bf16.msra.mxu0 %v379
    %636 = vmatprep.subr.bf16.mxu0 %v384
    %637 = vmatpush1.bf16.msra.mxu0 %v383
    %638 = vmatprep.subr.bf16.mxu0 %v388
    %639 = vmatpush1.bf16.msra.mxu0 %v387
    %640 = vmatprep.subr.bf16.mxu0 %v392
    %641 = vmatpush1.bf16.msra.mxu0 %v391
    %642 = vmatprep.subr.bf16.mxu0 %v396
    %643 = vmatpush1.bf16.msra.mxu0 %v395
    %644 = vmatprep.subr.bf16.mxu0 %v400
    %645 = vmatpush1.bf16.msra.mxu0 %v399
    %646 = vmatprep.subr.bf16.mxu0 %v404
    %647 = vmatpush1.bf16.msra.mxu0 %v403
    %648 = vmatprep.subr.bf16.mxu0 %v408
    %649 = vmatpush1.bf16.msra.mxu0 %v407
    %650 = vmatprep.subr.bf16.mxu0 0
    %651 = vmatpush1.bf16.msra.mxu0 0
    %652 = vmatprep.subr.bf16.mxu0 0
    %653 = vmatpush1.bf16.msra.mxu0 0
    %654 = vmatprep.subr.bf16.mxu0 0
    %655 = vmatpush1.bf16.msra.mxu0 0
    %656 = vmatprep.subr.bf16.mxu0 0
    %657 = vmatpush1.bf16.msra.mxu0 0
    %658 = vmatprep.subr.bf16.mxu0 0
    %659 = vmatpush1.bf16.msra.mxu0 0
    %660 = vmatprep.subr.bf16.mxu0 0
    %661 = vmatpush1.bf16.msra.mxu0 0
    %662 = vmatprep.subr.bf16.mxu0 0
    %663 = vmatpush1.bf16.msra.mxu0 0
    %664 = vmatprep.subr.bf16.mxu0 0
    %665 = vmatpush1.bf16.msra.mxu0 0
    %666 = vmatprep.mubr.bf16.mxu0 0
    %667 = vmatmul.mubr.bf16.gmra.mrb[0].mxu0 %v249
    %v668 = vpop.f32.mrb[0].mxu0
    %v669 = vadd.f32 %v176, %v668
    %v670 = vpop.f32.mrb[0].mxu0
    %v671 = vadd.f32 %v180, %v670
    %v672 = vpop.f32.mrb[0].mxu0
    %v673 = vadd.f32 %v176, %v672
    %v674 = vpop.f32.mrb[0].mxu0
    %v675 = vadd.f32 %v180, %v674
    %676 = vmatprep.mubr.bf16.mxu0 0
    %677 = vmatmul.mubr.bf16.gmra.mrb[0].mxu0 %v250
    %v678 = vpop.f32.mrb[0].mxu0
    %v679 = vadd.f32 %v176, %v678
    %v680 = vpop.f32.mrb[0].mxu0
    %v681 = vadd.f32 %v180, %v680
    %v682 = vpop.f32.mrb[0].mxu0
    %v683 = vadd.f32 %v176, %v682
    %v684 = vpop.f32.mrb[0].mxu0
    %v685 = vadd.f32 %v180, %v684
    %686 = vmatprep.mubr.bf16.mxu0 0
    %687 = vmatmul.mubr.bf16.gmra.mrb[0].mxu0 %v251
    %v688 = vpop.f32.mrb[0].mxu0
    %v689 = vadd.f32 %v176, %v688
    %v690 = vpop.f32.mrb[0].mxu0
    %v691 = vadd.f32 %v180, %v690
    %v692 = vpop.f32.mrb[0].mxu0
    %v693 = vadd.f32 %v176, %v692
    %v694 = vpop.f32.mrb[0].mxu0
    %v695 = vadd.f32 %v180, %v694
    %696 = vmatprep.mubr.bf16.mxu0 0
    %697 = vmatmul.mubr.bf16.gmra.mrb[0].mxu0 %v252
    %v698 = vpop.f32.mrb[0].mxu0
    %v699 = vadd.f32 %v176, %v698
    %v700 = vpop.f32.mrb[0].mxu0
    %v701 = vadd.f32 %v180, %v700
    %v702 = vpop.f32.mrb[0].mxu0
    %v703 = vadd.f32 %v176, %v702
    %v704 = vpop.f32.mrb[0].mxu0
    %v705 = vadd.f32 %v180, %v704
    %706 = vmatprep.mubr.bf16.mxu0 0
    %707 = vmatmul.mubr.bf16.gmra.mrb[0].mxu0 %v253
    %v708 = vpop.f32.mrb[0].mxu0
    %v709 = vadd.f32 %v176, %v708
    %v710 = vpop.f32.mrb[0].mxu0
    %v711 = vadd.f32 %v180, %v710
    %v712 = vpop.f32.mrb[0].mxu0
    %v713 = vadd.f32 %v176, %v712
    %v714 = vpop.f32.mrb[0].mxu0
    %v715 = vadd.f32 %v180, %v714
    %716 = vmatprep.mubr.bf16.mxu0 0
    %717 = vmatmul.mubr.bf16.gmra.mrb[0].mxu0 %v254
    %v718 = vpop.f32.mrb[0].mxu0
    %v719 = vadd.f32 %v176, %v718
    %v720 = vpop.f32.mrb[0].mxu0
    %v721 = vadd.f32 %v180, %v720
    %v722 = vpop.f32.mrb[0].mxu0
    %v723 = vadd.f32 %v176, %v722
    %v724 = vpop.f32.mrb[0].mxu0
    %v725 = vadd.f32 %v180, %v724
    %726 = vmatprep.mubr.bf16.mxu0 0
    %727 = vmatmul.mubr.bf16.gmra.mrb[0].mxu0 %v255
    %v728 = vpop.f32.mrb[0].mxu0
    %v729 = vadd.f32 %v176, %v728
    %v730 = vpop.f32.mrb[0].mxu0
    %v731 = vadd.f32 %v180, %v730
    %v732 = vpop.f32.mrb[0].mxu0
    %v733 = vadd.f32 %v176, %v732
    %v734 = vpop.f32.mrb[0].mxu0
    %v735 = vadd.f32 %v180, %v734
    %736 = vmatprep.mubr.bf16.mxu0 0
    %737 = vmatmul.mubr.bf16.gmra.mrb[0].mxu0 %v256
    %v738 = vpop.f32.mrb[0].mxu0
    %v739 = vadd.f32 %v176, %v738
    %v740 = vpop.f32.mrb[0].mxu0
    %v741 = vadd.f32 %v180, %v740
    %v742 = vpop.f32.mrb[0].mxu0
    %v743 = vadd.f32 %v176, %v742
    %v744 = vpop.f32.mrb[0].mxu0
    %v745 = vadd.f32 %v180, %v744
    %746 = vmatprep.mubr.bf16.mxu0 0
    %747 = vmatmul.mubr.bf16.gmra.mrb[0].mxu0 %v257
    %v748 = vpop.f32.mrb[0].mxu0
    %v749 = vadd.f32 %v176, %v748
    %v750 = vpop.f32.mrb[0].mxu0
    %v751 = vadd.f32 %v180, %v750
    %v752 = vpop.f32.mrb[0].mxu0
    %v753 = vadd.f32 %v176, %v752
    %v754 = vpop.f32.mrb[0].mxu0
    %v755 = vadd.f32 %v180, %v754
    %756 = vmatprep.mubr.bf16.mxu0 0
    %757 = vmatmul.mubr.bf16.gmra.mrb[0].mxu0 %v258
    %v758 = vpop.f32.mrb[0].mxu0
    %v759 = vadd.f32 %v176, %v758
    %v760 = vpop.f32.mrb[0].mxu0
    %v761 = vadd.f32 %v180, %v760
    %v762 = vpop.f32.mrb[0].mxu0
    %v763 = vadd.f32 %v176, %v762
    %v764 = vpop.f32.mrb[0].mxu0
    %v765 = vadd.f32 %v180, %v764
    %766 = vmatprep.mubr.bf16.mxu0 0
    %767 = vmatmul.mubr.bf16.gmra.mrb[0].mxu0 %v259
    %v768 = vpop.f32.mrb[0].mxu0
    %v769 = vadd.f32 %v176, %v768
    %v770 = vpop.f32.mrb[0].mxu0
    %v771 = vadd.f32 %v180, %v770
    %v772 = vpop.f32.mrb[0].mxu0
    %v773 = vadd.f32 %v176, %v772
    %v774 = vpop.f32.mrb[0].mxu0
    %v775 = vadd.f32 %v180, %v774
    %776 = vmatprep.mubr.bf16.mxu0 0
    %777 = vmatmul.mubr.bf16.gmra.mrb[0].mxu0 %v260
    %v778 = vpop.f32.mrb[0].mxu0
    %v779 = vadd.f32 %v176, %v778
    %v780 = vpop.f32.mrb[0].mxu0
    %v781 = vadd.f32 %v180, %v780
    %v782 = vpop.f32.mrb[0].mxu0
    %v783 = vadd.f32 %v176, %v782
    %v784 = vpop.f32.mrb[0].mxu0
    %v785 = vadd.f32 %v180, %v784
    %786 = vmatprep.mubr.bf16.mxu0 0
    %787 = vmatmul.mubr.bf16.gmra.mrb[0].mxu0 %v261
    %v788 = vpop.f32.mrb[0].mxu0
    %v789 = vadd.f32 %v176, %v788
    %v790 = vpop.f32.mrb[0].mxu0
    %v791 = vadd.f32 %v180, %v790
    %v792 = vpop.f32.mrb[0].mxu0
    %v793 = vadd.f32 %v176, %v792
    %v794 = vpop.f32.mrb[0].mxu0
    %v795 = vadd.f32 %v180, %v794
    %796 = vmatprep.mubr.bf16.mxu0 0
    %797 = vmatmul.mubr.bf16.gmra.mrb[0].mxu0 %v262
    %v798 = vpop.f32.mrb[0].mxu0
    %v799 = vadd.f32 %v176, %v798
    %v800 = vpop.f32.mrb[0].mxu0
    %v801 = vadd.f32 %v180, %v800
    %v802 = vpop.f32.mrb[0].mxu0
    %v803 = vadd.f32 %v176, %v802
    %v804 = vpop.f32.mrb[0].mxu0
    %v805 = vadd.f32 %v180, %v804
    %806 = vmatprep.mubr.bf16.mxu0 0
    %807 = vmatmul.mubr.bf16.gmra.mrb[0].mxu0 %v263
    %v808 = vpop.f32.mrb[0].mxu0
    %v809 = vadd.f32 %v176, %v808
    %v810 = vpop.f32.mrb[0].mxu0
    %v811 = vadd.f32 %v180, %v810
    %v812 = vpop.f32.mrb[0].mxu0
    %v813 = vadd.f32 %v176, %v812
    %v814 = vpop.f32.mrb[0].mxu0
    %v815 = vadd.f32 %v180, %v814
    %816 = vmatprep.mubr.bf16.mxu0 0
    %817 = vmatmul.mubr.bf16.gmra.mrb[0].mxu0 %v264
    %v818 = vpop.f32.mrb[0].mxu0
    %v819 = vadd.f32 %v176, %v818
    %v820 = vpop.f32.mrb[0].mxu0
    %v821 = vadd.f32 %v180, %v820
    %v822 = vpop.f32.mrb[0].mxu0
    %v823 = vadd.f32 %v176, %v822
    %v824 = vpop.f32.mrb[0].mxu0
    %v825 = vadd.f32 %v180, %v824
    %826 = vdwg.mxu0
    %v827 = vmul.f32 %v476, %v476
    %v828 = vmul.f32 %v478, %v478
    %v829 = vmul.f32 %v669, %v669
    %v830 = vmul.f32 %v671, %v671
    %v831 = vmul.f32 %v480, %v480
    %v832 = vmul.f32 %v482, %v482
    %v833 = vmul.f32 %v673, %v673
    %v834 = vmul.f32 %v675, %v675
    %v835 = vmul.f32 %v486, %v486
    %v836 = vmul.f32 %v488, %v488
    %v837 = vmul.f32 %v679, %v679
    %v838 = vmul.f32 %v681, %v681
    %v839 = vmul.f32 %v490, %v490
    %v840 = vmul.f32 %v492, %v492
    %v841 = vmul.f32 %v683, %v683
    %v842 = vmul.f32 %v685, %v685
    %v843 = vmul.f32 %v496, %v496
    %v844 = vmul.f32 %v498, %v498
    %v845 = vmul.f32 %v689, %v689
    %v846 = vmul.f32 %v691, %v691
    %v847 = vmul.f32 %v500, %v500
    %v848 = vmul.f32 %v502, %v502
    %v849 = vmul.f32 %v693, %v693
    %v850 = vmul.f32 %v695, %v695
    %v851 = vmul.f32 %v506, %v506
    %v852 = vmul.f32 %v508, %v508
    %v853 = vmul.f32 %v699, %v699
    %v854 = vmul.f32 %v701, %v701
    %v855 = vmul.f32 %v510, %v510
    %v856 = vmul.f32 %v512, %v512
    %v857 = vmul.f32 %v703, %v703
    %v858 = vmul.f32 %v705, %v705
    %v859 = vmul.f32 %v516, %v516
    %v860 = vmul.f32 %v518, %v518
    %v861 = vmul.f32 %v709, %v709
    %v862 = vmul.f32 %v711, %v711
    %v863 = vmul.f32 %v520, %v520
    %v864 = vmul.f32 %v522, %v522
    %v865 = vmul.f32 %v713, %v713
    %v866 = vmul.f32 %v715, %v715
    %v867 = vmul.f32 %v526, %v526
    %v868 = vmul.f32 %v528, %v528
    %v869 = vmul.f32 %v719, %v719
    %v870 = vmul.f32 %v721, %v721
    %v871 = vmul.f32 %v530, %v530
    %v872 = vmul.f32 %v532, %v532
    %v873 = vmul.f32 %v723, %v723
    %v874 = vmul.f32 %v725, %v725
    %v875 = vmul.f32 %v536, %v536
    %v876 = vmul.f32 %v538, %v538
    %v877 = vmul.f32 %v729, %v729
    %v878 = vmul.f32 %v731, %v731
    %v879 = vmul.f32 %v540, %v540
    %v880 = vmul.f32 %v542, %v542
    %v881 = vmul.f32 %v733, %v733
    %v882 = vmul.f32 %v735, %v735
    %v883 = vmul.f32 %v546, %v546
    %v884 = vmul.f32 %v548, %v548
    %v885 = vmul.f32 %v739, %v739
    %v886 = vmul.f32 %v741, %v741
    %v887 = vmul.f32 %v550, %v550
    %v888 = vmul.f32 %v552, %v552
    %v889 = vmul.f32 %v743, %v743
    %v890 = vmul.f32 %v745, %v745
    %v891 = vmul.f32 %v556, %v556
    %v892 = vmul.f32 %v558, %v558
    %v893 = vmul.f32 %v749, %v749
    %v894 = vmul.f32 %v751, %v751
    %v895 = vmul.f32 %v560, %v560
    %v896 = vmul.f32 %v562, %v562
    %v897 = vmul.f32 %v753, %v753
    %v898 = vmul.f32 %v755, %v755
    %v899 = vmul.f32 %v566, %v566
    %v900 = vmul.f32 %v568, %v568
    %v901 = vmul.f32 %v759, %v759
    %v902 = vmul.f32 %v761, %v761
    %v903 = vmul.f32 %v570, %v570
    %v904 = vmul.f32 %v572, %v572
    %v905 = vmul.f32 %v763, %v763
    %v906 = vmul.f32 %v765, %v765
    %v907 = vmul.f32 %v576, %v576
    %v908 = vmul.f32 %v578, %v578
    %v909 = vmul.f32 %v769, %v769
    %v910 = vmul.f32 %v771, %v771
    %v911 = vmul.f32 %v580, %v580
    %v912 = vmul.f32 %v582, %v582
    %v913 = vmul.f32 %v773, %v773
    %v914 = vmul.f32 %v775, %v775
    %v915 = vmul.f32 %v586, %v586
    %v916 = vmul.f32 %v588, %v588
    %v917 = vmul.f32 %v779, %v779
    %v918 = vmul.f32 %v781, %v781
    %v919 = vmul.f32 %v590, %v590
    %v920 = vmul.f32 %v592, %v592
    %v921 = vmul.f32 %v783, %v783
    %v922 = vmul.f32 %v785, %v785
    %v923 = vmul.f32 %v596, %v596
    %v924 = vmul.f32 %v598, %v598
    %v925 = vmul.f32 %v789, %v789
    %v926 = vmul.f32 %v791, %v791
    %v927 = vmul.f32 %v600, %v600
    %v928 = vmul.f32 %v602, %v602
    %v929 = vmul.f32 %v793, %v793
    %v930 = vmul.f32 %v795, %v795
    %v931 = vmul.f32 %v606, %v606
    %v932 = vmul.f32 %v608, %v608
    %v933 = vmul.f32 %v799, %v799
    %v934 = vmul.f32 %v801, %v801
    %v935 = vmul.f32 %v610, %v610
    %v936 = vmul.f32 %v612, %v612
    %v937 = vmul.f32 %v803, %v803
    %v938 = vmul.f32 %v805, %v805
    %v939 = vmul.f32 %v616, %v616
    %v940 = vmul.f32 %v618, %v618
    %v941 = vmul.f32 %v809, %v809
    %v942 = vmul.f32 %v811, %v811
    %v943 = vmul.f32 %v620, %v620
    %v944 = vmul.f32 %v622, %v622
    %v945 = vmul.f32 %v813, %v813
    %v946 = vmul.f32 %v815, %v815
    %v947 = vmul.f32 %v626, %v626
    %v948 = vmul.f32 %v628, %v628
    %v949 = vmul.f32 %v819, %v819
    %v950 = vmul.f32 %v821, %v821
    %v951 = vmul.f32 %v630, %v630
    %v952 = vmul.f32 %v632, %v632
    %v953 = vmul.f32 %v823, %v823
    %v954 = vmul.f32 %v825, %v825
    %v955 = vmul.f32 %v476, %v827
    %v956 = vmul.f32 %v478, %v828
    %v957 = vmul.f32 %v669, %v829
    %v958 = vmul.f32 %v671, %v830
    %v959 = vmul.f32 %v480, %v831
    %v960 = vmul.f32 %v482, %v832
    %v961 = vmul.f32 %v673, %v833
    %v962 = vmul.f32 %v675, %v834
    %v963 = vmul.f32 %v486, %v835
    %v964 = vmul.f32 %v488, %v836
    %v965 = vmul.f32 %v679, %v837
    %v966 = vmul.f32 %v681, %v838
    %v967 = vmul.f32 %v490, %v839
    %v968 = vmul.f32 %v492, %v840
    %v969 = vmul.f32 %v683, %v841
    %v970 = vmul.f32 %v685, %v842
    %v971 = vmul.f32 %v496, %v843
    %v972 = vmul.f32 %v498, %v844
    %v973 = vmul.f32 %v689, %v845
    %v974 = vmul.f32 %v691, %v846
    %v975 = vmul.f32 %v500, %v847
    %v976 = vmul.f32 %v502, %v848
    %v977 = vmul.f32 %v693, %v849
    %v978 = vmul.f32 %v695, %v850
    %v979 = vmul.f32 %v506, %v851
    %v980 = vmul.f32 %v508, %v852
    %v981 = vmul.f32 %v699, %v853
    %v982 = vmul.f32 %v701, %v854
    %v983 = vmul.f32 %v510, %v855
    %v984 = vmul.f32 %v512, %v856
    %v985 = vmul.f32 %v703, %v857
    %v986 = vmul.f32 %v705, %v858
    %v987 = vmul.f32 %v516, %v859
    %v988 = vmul.f32 %v518, %v860
    %v989 = vmul.f32 %v709, %v861
    %v990 = vmul.f32 %v711, %v862
    %v991 = vmul.f32 %v520, %v863
    %v992 = vmul.f32 %v522, %v864
    %v993 = vmul.f32 %v713, %v865
    %v994 = vmul.f32 %v715, %v866
    %v995 = vmul.f32 %v526, %v867
    %v996 = vmul.f32 %v528, %v868
    %v997 = vmul.f32 %v719, %v869
    %v998 = vmul.f32 %v721, %v870
    %v999 = vmul.f32 %v530, %v871
    %v1000 = vmul.f32 %v532, %v872
    %v1001 = vmul.f32 %v723, %v873
    %v1002 = vmul.f32 %v725, %v874
    %v1003 = vmul.f32 %v536, %v875
    %v1004 = vmul.f32 %v538, %v876
    %v1005 = vmul.f32 %v729, %v877
    %v1006 = vmul.f32 %v731, %v878
    %v1007 = vmul.f32 %v540, %v879
    %v1008 = vmul.f32 %v542, %v880
    %v1009 = vmul.f32 %v733, %v881
    %v1010 = vmul.f32 %v735, %v882
    %v1011 = vmul.f32 %v546, %v883
    %v1012 = vmul.f32 %v548, %v884
    %v1013 = vmul.f32 %v739, %v885
    %v1014 = vmul.f32 %v741, %v886
    %v1015 = vmul.f32 %v550, %v887
    %v1016 = vmul.f32 %v552, %v888
    %v1017 = vmul.f32 %v743, %v889
    %v1018 = vmul.f32 %v745, %v890
    %v1019 = vmul.f32 %v556, %v891
    %v1020 = vmul.f32 %v558, %v892
    %v1021 = vmul.f32 %v749, %v893
    %v1022 = vmul.f32 %v751, %v894
    %v1023 = vmul.f32 %v560, %v895
    %v1024 = vmul.f32 %v562, %v896
    %v1025 = vmul.f32 %v753, %v897
    %v1026 = vmul.f32 %v755, %v898
    %v1027 = vmul.f32 %v566, %v899
    %v1028 = vmul.f32 %v568, %v900
    %v1029 = vmul.f32 %v759, %v901
    %v1030 = vmul.f32 %v761, %v902
    %v1031 = vmul.f32 %v570, %v903
    %v1032 = vmul.f32 %v572, %v904
    %v1033 = vmul.f32 %v763, %v905
    %v1034 = vmul.f32 %v765, %v906
    %v1035 = vmul.f32 %v576, %v907
    %v1036 = vmul.f32 %v578, %v908
    %v1037 = vmul.f32 %v769, %v909
    %v1038 = vmul.f32 %v771, %v910
    %v1039 = vmul.f32 %v580, %v911
    %v1040 = vmul.f32 %v582, %v912
    %v1041 = vmul.f32 %v773, %v913
    %v1042 = vmul.f32 %v775, %v914
    %v1043 = vmul.f32 %v586, %v915
    %v1044 = vmul.f32 %v588, %v916
    %v1045 = vmul.f32 %v779, %v917
    %v1046 = vmul.f32 %v781, %v918
    %v1047 = vmul.f32 %v590, %v919
    %v1048 = vmul.f32 %v592, %v920
    %v1049 = vmul.f32 %v783, %v921
    %v1050 = vmul.f32 %v785, %v922
    %v1051 = vmul.f32 %v596, %v923
    %v1052 = vmul.f32 %v598, %v924
    %v1053 = vmul.f32 %v789, %v925
    %v1054 = vmul.f32 %v791, %v926
    %v1055 = vmul.f32 %v600, %v927
    %v1056 = vmul.f32 %v602, %v928
    %v1057 = vmul.f32 %v793, %v929
    %v1058 = vmul.f32 %v795, %v930
    %v1059 = vmul.f32 %v606, %v931
    %v1060 = vmul.f32 %v608, %v932
    %v1061 = vmul.f32 %v799, %v933
    %v1062 = vmul.f32 %v801, %v934
    %v1063 = vmul.f32 %v610, %v935
    %v1064 = vmul.f32 %v612, %v936
    %v1065 = vmul.f32 %v803, %v937
    %v1066 = vmul.f32 %v805, %v938
    %v1067 = vmul.f32 %v616, %v939
    %v1068 = vmul.f32 %v618, %v940
    %v1069 = vmul.f32 %v809, %v941
    %v1070 = vmul.f32 %v811, %v942
    %v1071 = vmul.f32 %v620, %v943
    %v1072 = vmul.f32 %v622, %v944
    %v1073 = vmul.f32 %v813, %v945
    %v1074 = vmul.f32 %v815, %v946
    %v1075 = vmul.f32 %v626, %v947
    %v1076 = vmul.f32 %v628, %v948
    %v1077 = vmul.f32 %v819, %v949
    %v1078 = vmul.f32 %v821, %v950
    %v1079 = vmul.f32 %v630, %v951
    %v1080 = vmul.f32 %v632, %v952
    %v1081 = vmul.f32 %v823, %v953
    %v1082 = vmul.f32 %v825, %v954
    %v1083 = vmul.f32 %v955, 0.044715
    %v1084 = vmul.f32 %v956, 0.044715
    %v1085 = vmul.f32 %v957, 0.044715
    %v1086 = vmul.f32 %v958, 0.044715
    %v1087 = vmul.f32 %v959, 0.044715
    %v1088 = vmul.f32 %v960, 0.044715
    %v1089 = vmul.f32 %v961, 0.044715
    %v1090 = vmul.f32 %v962, 0.044715
    %v1091 = vmul.f32 %v963, 0.044715
    %v1092 = vmul.f32 %v964, 0.044715
    %v1093 = vmul.f32 %v965, 0.044715
    %v1094 = vmul.f32 %v966, 0.044715
    %v1095 = vmul.f32 %v967, 0.044715
    %v1096 = vmul.f32 %v968, 0.044715
    %v1097 = vmul.f32 %v969, 0.044715
    %v1098 = vmul.f32 %v970, 0.044715
    %v1099 = vmul.f32 %v971, 0.044715
    %v1100 = vmul.f32 %v972, 0.044715
    %v1101 = vmul.f32 %v973, 0.044715
    %v1102 = vmul.f32 %v974, 0.044715
    %v1103 = vmul.f32 %v975, 0.044715
    %v1104 = vmul.f32 %v976, 0.044715
    %v1105 = vmul.f32 %v977, 0.044715
    %v1106 = vmul.f32 %v978, 0.044715
    %v1107 = vmul.f32 %v979, 0.044715
    %v1108 = vmul.f32 %v980, 0.044715
    %v1109 = vmul.f32 %v981, 0.044715
    %v1110 = vmul.f32 %v982, 0.044715
    %v1111 = vmul.f32 %v983, 0.044715
    %v1112 = vmul.f32 %v984, 0.044715
    %v1113 = vmul.f32 %v985, 0.044715
    %v1114 = vmul.f32 %v986, 0.044715
    %v1115 = vmul.f32 %v987, 0.044715
    %v1116 = vmul.f32 %v988, 0.044715
    %v1117 = vmul.f32 %v989, 0.044715
    %v1118 = vmul.f32 %v990, 0.044715
    %v1119 = vmul.f32 %v991, 0.044715
    %v1120 = vmul.f32 %v992, 0.044715
    %v1121 = vmul.f32 %v993, 0.044715
    %v1122 = vmul.f32 %v994, 0.044715
    %v1123 = vmul.f32 %v995, 0.044715
    %v1124 = vmul.f32 %v996, 0.044715
    %v1125 = vmul.f32 %v997, 0.044715
    %v1126 = vmul.f32 %v998, 0.044715
    %v1127 = vmul.f32 %v999, 0.044715
    %v1128 = vmul.f32 %v1000, 0.044715
    %v1129 = vmul.f32 %v1001, 0.044715
    %v1130 = vmul.f32 %v1002, 0.044715
    %v1131 = vmul.f32 %v1003, 0.044715
    %v1132 = vmul.f32 %v1004, 0.044715
    %v1133 = vmul.f32 %v1005, 0.044715
    %v1134 = vmul.f32 %v1006, 0.044715
    %v1135 = vmul.f32 %v1007, 0.044715
    %v1136 = vmul.f32 %v1008, 0.044715
    %v1137 = vmul.f32 %v1009, 0.044715
    %v1138 = vmul.f32 %v1010, 0.044715
    %v1139 = vmul.f32 %v1011, 0.044715
    %v1140 = vmul.f32 %v1012, 0.044715
    %v1141 = vmul.f32 %v1013, 0.044715
    %v1142 = vmul.f32 %v1014, 0.044715
    %v1143 = vmul.f32 %v1015, 0.044715
    %v1144 = vmul.f32 %v1016, 0.044715
    %v1145 = vmul.f32 %v1017, 0.044715
    %v1146 = vmul.f32 %v1018, 0.044715
    %v1147 = vmul.f32 %v1019, 0.044715
    %v1148 = vmul.f32 %v1020, 0.044715
    %v1149 = vmul.f32 %v1021, 0.044715
    %v1150 = vmul.f32 %v1022, 0.044715
    %v1151 = vmul.f32 %v1023, 0.044715
    %v1152 = vmul.f32 %v1024, 0.044715
    %v1153 = vmul.f32 %v1025, 0.044715
    %v1154 = vmul.f32 %v1026, 0.044715
    %v1155 = vmul.f32 %v1027, 0.044715
    %v1156 = vmul.f32 %v1028, 0.044715
    %v1157 = vmul.f32 %v1029, 0.044715
    %v1158 = vmul.f32 %v1030, 0.044715
    %v1159 = vmul.f32 %v1031, 0.044715
    %v1160 = vmul.f32 %v1032, 0.044715
    %v1161 = vmul.f32 %v1033, 0.044715
    %v1162 = vmul.f32 %v1034, 0.044715
    %v1163 = vmul.f32 %v1035, 0.044715
    %v1164 = vmul.f32 %v1036, 0.044715
    %v1165 = vmul.f32 %v1037, 0.044715
    %v1166 = vmul.f32 %v1038, 0.044715
    %v1167 = vmul.f32 %v1039, 0.044715
    %v1168 = vmul.f32 %v1040, 0.044715
    %v1169 = vmul.f32 %v1041, 0.044715
    %v1170 = vmul.f32 %v1042, 0.044715
    %v1171 = vmul.f32 %v1043, 0.044715
    %v1172 = vmul.f32 %v1044, 0.044715
    %v1173 = vmul.f32 %v1045, 0.044715
    %v1174 = vmul.f32 %v1046, 0.044715
    %v1175 = vmul.f32 %v1047, 0.044715
    %v1176 = vmul.f32 %v1048, 0.044715
    %v1177 = vmul.f32 %v1049, 0.044715
    %v1178 = vmul.f32 %v1050, 0.044715
    %v1179 = vmul.f32 %v1051, 0.044715
    %v1180 = vmul.f32 %v1052, 0.044715
    %v1181 = vmul.f32 %v1053, 0.044715
    %v1182 = vmul.f32 %v1054, 0.044715
    %v1183 = vmul.f32 %v1055, 0.044715
    %v1184 = vmul.f32 %v1056, 0.044715
    %v1185 = vmul.f32 %v1057, 0.044715
    %v1186 = vmul.f32 %v1058, 0.044715
    %v1187 = vmul.f32 %v1059, 0.044715
    %v1188 = vmul.f32 %v1060, 0.044715
    %v1189 = vmul.f32 %v1061, 0.044715
    %v1190 = vmul.f32 %v1062, 0.044715
    %v1191 = vmul.f32 %v1063, 0.044715
    %v1192 = vmul.f32 %v1064, 0.044715
    %v1193 = vmul.f32 %v1065, 0.044715
    %v1194 = vmul.f32 %v1066, 0.044715
    %v1195 = vmul.f32 %v1067, 0.044715
    %v1196 = vmul.f32 %v1068, 0.044715
    %v1197 = vmul.f32 %v1069, 0.044715
    %v1198 = vmul.f32 %v1070, 0.044715
    %v1199 = vmul.f32 %v1071, 0.044715
    %v1200 = vmul.f32 %v1072, 0.044715
    %v1201 = vmul.f32 %v1073, 0.044715
    %v1202 = vmul.f32 %v1074, 0.044715
    %v1203 = vmul.f32 %v1075, 0.044715
    %v1204 = vmul.f32 %v1076, 0.044715
    %v1205 = vmul.f32 %v1077, 0.044715
    %v1206 = vmul.f32 %v1078, 0.044715
    %v1207 = vmul.f32 %v1079, 0.044715
    %v1208 = vmul.f32 %v1080, 0.044715
    %v1209 = vmul.f32 %v1081, 0.044715
    %v1210 = vmul.f32 %v1082, 0.044715
    %v1211 = vadd.f32 %v476, %v1083
    %v1212 = vadd.f32 %v478, %v1084
    %v1213 = vadd.f32 %v669, %v1085
    %v1214 = vadd.f32 %v671, %v1086
    %v1215 = vadd.f32 %v480, %v1087
    %v1216 = vadd.f32 %v482, %v1088
    %v1217 = vadd.f32 %v673, %v1089
    %v1218 = vadd.f32 %v675, %v1090
    %v1219 = vadd.f32 %v486, %v1091
    %v1220 = vadd.f32 %v488, %v1092
    %v1221 = vadd.f32 %v679, %v1093
    %v1222 = vadd.f32 %v681, %v1094
    %v1223 = vadd.f32 %v490, %v1095
    %v1224 = vadd.f32 %v492, %v1096
    %v1225 = vadd.f32 %v683, %v1097
    %v1226 = vadd.f32 %v685, %v1098
    %v1227 = vadd.f32 %v496, %v1099
    %v1228 = vadd.f32 %v498, %v1100
    %v1229 = vadd.f32 %v689, %v1101
    %v1230 = vadd.f32 %v691, %v1102
    %v1231 = vadd.f32 %v500, %v1103
    %v1232 = vadd.f32 %v502, %v1104
    %v1233 = vadd.f32 %v693, %v1105
    %v1234 = vadd.f32 %v695, %v1106
    %v1235 = vadd.f32 %v506, %v1107
    %v1236 = vadd.f32 %v508, %v1108
    %v1237 = vadd.f32 %v699, %v1109
    %v1238 = vadd.f32 %v701, %v1110
    %v1239 = vadd.f32 %v510, %v1111
    %v1240 = vadd.f32 %v512, %v1112
    %v1241 = vadd.f32 %v703, %v1113
    %v1242 = vadd.f32 %v705, %v1114
    %v1243 = vadd.f32 %v516, %v1115
    %v1244 = vadd.f32 %v518, %v1116
    %v1245 = vadd.f32 %v709, %v1117
    %v1246 = vadd.f32 %v711, %v1118
    %v1247 = vadd.f32 %v520, %v1119
    %v1248 = vadd.f32 %v522, %v1120
    %v1249 = vadd.f32 %v713, %v1121
    %v1250 = vadd.f32 %v715, %v1122
    %v1251 = vadd.f32 %v526, %v1123
    %v1252 = vadd.f32 %v528, %v1124
    %v1253 = vadd.f32 %v719, %v1125
    %v1254 = vadd.f32 %v721, %v1126
    %v1255 = vadd.f32 %v530, %v1127
    %v1256 = vadd.f32 %v532, %v1128
    %v1257 = vadd.f32 %v723, %v1129
    %v1258 = vadd.f32 %v725, %v1130
    %v1259 = vadd.f32 %v536, %v1131
    %v1260 = vadd.f32 %v538, %v1132
    %v1261 = vadd.f32 %v729, %v1133
    %v1262 = vadd.f32 %v731, %v1134
    %v1263 = vadd.f32 %v540, %v1135
    %v1264 = vadd.f32 %v542, %v1136
    %v1265 = vadd.f32 %v733, %v1137
    %v1266 = vadd.f32 %v735, %v1138
    %v1267 = vadd.f32 %v546, %v1139
    %v1268 = vadd.f32 %v548, %v1140
    %v1269 = vadd.f32 %v739, %v1141
    %v1270 = vadd.f32 %v741, %v1142
    %v1271 = vadd.f32 %v550, %v1143
    %v1272 = vadd.f32 %v552, %v1144
    %v1273 = vadd.f32 %v743, %v1145
    %v1274 = vadd.f32 %v745, %v1146
    %v1275 = vadd.f32 %v556, %v1147
    %v1276 = vadd.f32 %v558, %v1148
    %v1277 = vadd.f32 %v749, %v1149
    %v1278 = vadd.f32 %v751, %v1150
    %v1279 = vadd.f32 %v560, %v1151
    %v1280 = vadd.f32 %v562, %v1152
    %v1281 = vadd.f32 %v753, %v1153
    %v1282 = vadd.f32 %v755, %v1154
    %v1283 = vadd.f32 %v566, %v1155
    %v1284 = vadd.f32 %v568, %v1156
    %v1285 = vadd.f32 %v759, %v1157
    %v1286 = vadd.f32 %v761, %v1158
    %v1287 = vadd.f32 %v570, %v1159
    %v1288 = vadd.f32 %v572, %v1160
    %v1289 = vadd.f32 %v763, %v1161
    %v1290 = vadd.f32 %v765, %v1162
    %v1291 = vadd.f32 %v576, %v1163
    %v1292 = vadd.f32 %v578, %v1164
    %v1293 = vadd.f32 %v769, %v1165
    %v1294 = vadd.f32 %v771, %v1166
    %v1295 = vadd.f32 %v580, %v1167
    %v1296 = vadd.f32 %v582, %v1168
    %v1297 = vadd.f32 %v773, %v1169
    %v1298 = vadd.f32 %v775, %v1170
    %v1299 = vadd.f32 %v586, %v1171
    %v1300 = vadd.f32 %v588, %v1172
    %v1301 = vadd.f32 %v779, %v1173
    %v1302 = vadd.f32 %v781, %v1174
    %v1303 = vadd.f32 %v590, %v1175
    %v1304 = vadd.f32 %v592, %v1176
    %v1305 = vadd.f32 %v783, %v1177
    %v1306 = vadd.f32 %v785, %v1178
    %v1307 = vadd.f32 %v596, %v1179
    %v1308 = vadd.f32 %v598, %v1180
    %v1309 = vadd.f32 %v789, %v1181
    %v1310 = vadd.f32 %v791, %v1182
    %v1311 = vadd.f32 %v600, %v1183
    %v1312 = vadd.f32 %v602, %v1184
    %v1313 = vadd.f32 %v793, %v1185
    %v1314 = vadd.f32 %v795, %v1186
    %v1315 = vadd.f32 %v606, %v1187
    %v1316 = vadd.f32 %v608, %v1188
    %v1317 = vadd.f32 %v799, %v1189
    %v1318 = vadd.f32 %v801, %v1190
    %v1319 = vadd.f32 %v610, %v1191
    %v1320 = vadd.f32 %v612, %v1192
    %v1321 = vadd.f32 %v803, %v1193
    %v1322 = vadd.f32 %v805, %v1194
    %v1323 = vadd.f32 %v616, %v1195
    %v1324 = vadd.f32 %v618, %v1196
    %v1325 = vadd.f32 %v809, %v1197
    %v1326 = vadd.f32 %v811, %v1198
    %v1327 = vadd.f32 %v620, %v1199
    %v1328 = vadd.f32 %v622, %v1200
    %v1329 = vadd.f32 %v813, %v1201
    %v1330 = vadd.f32 %v815, %v1202
    %v1331 = vadd.f32 %v626, %v1203
    %v1332 = vadd.f32 %v628, %v1204
    %v1333 = vadd.f32 %v819, %v1205
    %v1334 = vadd.f32 %v821, %v1206
    %v1335 = vadd.f32 %v630, %v1207
    %v1336 = vadd.f32 %v632, %v1208
    %v1337 = vadd.f32 %v823, %v1209
    %v1338 = vadd.f32 %v825, %v1210
    %v1339 = vmul.f32 %v1211, 0.7978846
    %v1340 = vmul.f32 %v1212, 0.7978846
    %v1341 = vmul.f32 %v1213, 0.7978846
    %v1342 = vmul.f32 %v1214, 0.7978846
    %v1343 = vmul.f32 %v1215, 0.7978846
    %v1344 = vmul.f32 %v1216, 0.7978846
    %v1345 = vmul.f32 %v1217, 0.7978846
    %v1346 = vmul.f32 %v1218, 0.7978846
    %v1347 = vmul.f32 %v1219, 0.7978846
    %v1348 = vmul.f32 %v1220, 0.7978846
    %v1349 = vmul.f32 %v1221, 0.7978846
    %v1350 = vmul.f32 %v1222, 0.7978846
    %v1351 = vmul.f32 %v1223, 0.7978846
    %v1352 = vmul.f32 %v1224, 0.7978846
    %v1353 = vmul.f32 %v1225, 0.7978846
    %v1354 = vmul.f32 %v1226, 0.7978846
    %v1355 = vmul.f32 %v1227, 0.7978846
    %v1356 = vmul.f32 %v1228, 0.7978846
    %v1357 = vmul.f32 %v1229, 0.7978846
    %v1358 = vmul.f32 %v1230, 0.7978846
    %v1359 = vmul.f32 %v1231, 0.7978846
    %v1360 = vmul.f32 %v1232, 0.7978846
    %v1361 = vmul.f32 %v1233, 0.7978846
    %v1362 = vmul.f32 %v1234, 0.7978846
    %v1363 = vmul.f32 %v1235, 0.7978846
    %v1364 = vmul.f32 %v1236, 0.7978846
    %v1365 = vmul.f32 %v1237, 0.7978846
    %v1366 = vmul.f32 %v1238, 0.7978846
    %v1367 = vmul.f32 %v1239, 0.7978846
    %v1368 = vmul.f32 %v1240, 0.7978846
    %v1369 = vmul.f32 %v1241, 0.7978846
    %v1370 = vmul.f32 %v1242, 0.7978846
    %v1371 = vmul.f32 %v1243, 0.7978846
    %v1372 = vmul.f32 %v1244, 0.7978846
    %v1373 = vmul.f32 %v1245, 0.7978846
    %v1374 = vmul.f32 %v1246, 0.7978846
    %v1375 = vmul.f32 %v1247, 0.7978846
    %v1376 = vmul.f32 %v1248, 0.7978846
    %v1377 = vmul.f32 %v1249, 0.7978846
    %v1378 = vmul.f32 %v1250, 0.7978846
    %v1379 = vmul.f32 %v1251, 0.7978846
    %v1380 = vmul.f32 %v1252, 0.7978846
    %v1381 = vmul.f32 %v1253, 0.7978846
    %v1382 = vmul.f32 %v1254, 0.7978846
    %v1383 = vmul.f32 %v1255, 0.7978846
    %v1384 = vmul.f32 %v1256, 0.7978846
    %v1385 = vmul.f32 %v1257, 0.7978846
    %v1386 = vmul.f32 %v1258, 0.7978846
    %v1387 = vmul.f32 %v1259, 0.7978846
    %v1388 = vmul.f32 %v1260, 0.7978846
    %v1389 = vmul.f32 %v1261, 0.7978846
    %v1390 = vmul.f32 %v1262, 0.7978846
    %v1391 = vmul.f32 %v1263, 0.7978846
    %v1392 = vmul.f32 %v1264, 0.7978846
    %v1393 = vmul.f32 %v1265, 0.7978846
    %v1394 = vmul.f32 %v1266, 0.7978846
    %v1395 = vmul.f32 %v1267, 0.7978846
    %v1396 = vmul.f32 %v1268, 0.7978846
    %v1397 = vmul.f32 %v1269, 0.7978846
    %v1398 = vmul.f32 %v1270, 0.7978846
    %v1399 = vmul.f32 %v1271, 0.7978846
    %v1400 = vmul.f32 %v1272, 0.7978846
    %v1401 = vmul.f32 %v1273, 0.7978846
    %v1402 = vmul.f32 %v1274, 0.7978846
    %v1403 = vmul.f32 %v1275, 0.7978846
    %v1404 = vmul.f32 %v1276, 0.7978846
    %v1405 = vmul.f32 %v1277, 0.7978846
    %v1406 = vmul.f32 %v1278, 0.7978846
    %v1407 = vmul.f32 %v1279, 0.7978846
    %v1408 = vmul.f32 %v1280, 0.7978846
    %v1409 = vmul.f32 %v1281, 0.7978846
    %v1410 = vmul.f32 %v1282, 0.7978846
    %v1411 = vmul.f32 %v1283, 0.7978846
    %v1412 = vmul.f32 %v1284, 0.7978846
    %v1413 = vmul.f32 %v1285, 0.7978846
    %v1414 = vmul.f32 %v1286, 0.7978846
    %v1415 = vmul.f32 %v1287, 0.7978846
    %v1416 = vmul.f32 %v1288, 0.7978846
    %v1417 = vmul.f32 %v1289, 0.7978846
    %v1418 = vmul.f32 %v1290, 0.7978846
    %v1419 = vmul.f32 %v1291, 0.7978846
    %v1420 = vmul.f32 %v1292, 0.7978846
    %v1421 = vmul.f32 %v1293, 0.7978846
    %v1422 = vmul.f32 %v1294, 0.7978846
    %v1423 = vmul.f32 %v1295, 0.7978846
    %v1424 = vmul.f32 %v1296, 0.7978846
    %v1425 = vmul.f32 %v1297, 0.7978846
    %v1426 = vmul.f32 %v1298, 0.7978846
    %v1427 = vmul.f32 %v1299, 0.7978846
    %v1428 = vmul.f32 %v1300, 0.7978846
    %v1429 = vmul.f32 %v1301, 0.7978846
    %v1430 = vmul.f32 %v1302, 0.7978846
    %v1431 = vmul.f32 %v1303, 0.7978846
    %v1432 = vmul.f32 %v1304, 0.7978846
    %v1433 = vmul.f32 %v1305, 0.7978846
    %v1434 = vmul.f32 %v1306, 0.7978846
    %v1435 = vmul.f32 %v1307, 0.7978846
    %v1436 = vmul.f32 %v1308, 0.7978846
    %v1437 = vmul.f32 %v1309, 0.7978846
    %v1438 = vmul.f32 %v1310, 0.7978846
    %v1439 = vmul.f32 %v1311, 0.7978846
    %v1440 = vmul.f32 %v1312, 0.7978846
    %v1441 = vmul.f32 %v1313, 0.7978846
    %v1442 = vmul.f32 %v1314, 0.7978846
    %v1443 = vmul.f32 %v1315, 0.7978846
    %v1444 = vmul.f32 %v1316, 0.7978846
    %v1445 = vmul.f32 %v1317, 0.7978846
    %v1446 = vmul.f32 %v1318, 0.7978846
    %v1447 = vmul.f32 %v1319, 0.7978846
    %v1448 = vmul.f32 %v1320, 0.7978846
    %v1449 = vmul.f32 %v1321, 0.7978846
    %v1450 = vmul.f32 %v1322, 0.7978846
    %v1451 = vmul.f32 %v1323, 0.7978846
    %v1452 = vmul.f32 %v1324, 0.7978846
    %v1453 = vmul.f32 %v1325, 0.7978846
    %v1454 = vmul.f32 %v1326, 0.7978846
    %v1455 = vmul.f32 %v1327, 0.7978846
    %v1456 = vmul.f32 %v1328, 0.7978846
    %v1457 = vmul.f32 %v1329, 0.7978846
    %v1458 = vmul.f32 %v1330, 0.7978846
    %v1459 = vmul.f32 %v1331, 0.7978846
    %v1460 = vmul.f32 %v1332, 0.7978846
    %v1461 = vmul.f32 %v1333, 0.7978846
    %v1462 = vmul.f32 %v1334, 0.7978846
    %v1463 = vmul.f32 %v1335, 0.7978846
    %v1464 = vmul.f32 %v1336, 0.7978846
    %v1465 = vmul.f32 %v1337, 0.7978846
    %v1466 = vmul.f32 %v1338, 0.7978846
    %v1467 = vtanh.pop %v1339
    %v1468 = vtanh.pop %v1340
    %v1469 = vtanh.pop %v1341
    %v1470 = vtanh.pop %v1342
    %v1471 = vtanh.pop %v1343
    %v1472 = vtanh.pop %v1344
    %v1473 = vtanh.pop %v1345
    %v1474 = vtanh.pop %v1346
    %v1475 = vtanh.pop %v1347
    %v1476 = vtanh.pop %v1348
    %v1477 = vtanh.pop %v1349
    %v1478 = vtanh.pop %v1350
    %v1479 = vtanh.pop %v1351
    %v1480 = vtanh.pop %v1352
    %v1481 = vtanh.pop %v1353
    %v1482 = vtanh.pop %v1354
    %v1483 = vtanh.pop %v1355
    %v1484 = vtanh.pop %v1356
    %v1485 = vtanh.pop %v1357
    %v1486 = vtanh.pop %v1358
    %v1487 = vtanh.pop %v1359
    %v1488 = vtanh.pop %v1360
    %v1489 = vtanh.pop %v1361
    %v1490 = vtanh.pop %v1362
    %v1491 = vtanh.pop %v1363
    %v1492 = vtanh.pop %v1364
    %v1493 = vtanh.pop %v1365
    %v1494 = vtanh.pop %v1366
    %v1495 = vtanh.pop %v1367
    %v1496 = vtanh.pop %v1368
    %v1497 = vtanh.pop %v1369
    %v1498 = vtanh.pop %v1370
    %v1499 = vtanh.pop %v1371
    %v1500 = vtanh.pop %v1372
    %v1501 = vtanh.pop %v1373
    %v1502 = vtanh.pop %v1374
    %v1503 = vtanh.pop %v1375
    %v1504 = vtanh.pop %v1376
    %v1505 = vtanh.pop %v1377
    %v1506 = vtanh.pop %v1378
    %v1507 = vtanh.pop %v1379
    %v1508 = vtanh.pop %v1380
    %v1509 = vtanh.pop %v1381
    %v1510 = vtanh.pop %v1382
    %v1511 = vtanh.pop %v1383
    %v1512 = vtanh.pop %v1384
    %v1513 = vtanh.pop %v1385
    %v1514 = vtanh.pop %v1386
    %v1515 = vtanh.pop %v1387
    %v1516 = vtanh.pop %v1388
    %v1517 = vtanh.pop %v1389
    %v1518 = vtanh.pop %v1390
    %v1519 = vtanh.pop %v1391
    %v1520 = vtanh.pop %v1392
    %v1521 = vtanh.pop %v1393
    %v1522 = vtanh.pop %v1394
    %v1523 = vtanh.pop %v1395
    %v1524 = vtanh.pop %v1396
    %v1525 = vtanh.pop %v1397
    %v1526 = vtanh.pop %v1398
    %v1527 = vtanh.pop %v1399
    %v1528 = vtanh.pop %v1400
    %v1529 = vtanh.pop %v1401
    %v1530 = vtanh.pop %v1402
    %v1531 = vtanh.pop %v1403
    %v1532 = vtanh.pop %v1404
    %v1533 = vtanh.pop %v1405
    %v1534 = vtanh.pop %v1406
    %v1535 = vtanh.pop %v1407
    %v1536 = vtanh.pop %v1408
    %v1537 = vtanh.pop %v1409
    %v1538 = vtanh.pop %v1410
    %v1539 = vtanh.pop %v1411
    %v1540 = vtanh.pop %v1412
    %v1541 = vtanh.pop %v1413
    %v1542 = vtanh.pop %v1414
    %v1543 = vtanh.pop %v1415
    %v1544 = vtanh.pop %v1416
    %v1545 = vtanh.pop %v1417
    %v1546 = vtanh.pop %v1418
    %v1547 = vtanh.pop %v1419
    %v1548 = vtanh.pop %v1420
    %v1549 = vtanh.pop %v1421
    %v1550 = vtanh.pop %v1422
    %v1551 = vtanh.pop %v1423
    %v1552 = vtanh.pop %v1424
    %v1553 = vtanh.pop %v1425
    %v1554 = vtanh.pop %v1426
    %v1555 = vtanh.pop %v1427
    %v1556 = vtanh.pop %v1428
    %v1557 = vtanh.pop %v1429
    %v1558 = vtanh.pop %v1430
    %v1559 = vtanh.pop %v1431
    %v1560 = vtanh.pop %v1432
    %v1561 = vtanh.pop %v1433
    %v1562 = vtanh.pop %v1434
    %v1563 = vtanh.pop %v1435
    %v1564 = vtanh.pop %v1436
    %v1565 = vtanh.pop %v1437
    %v1566 = vtanh.pop %v1438
    %v1567 = vtanh.pop %v1439
    %v1568 = vtanh.pop %v1440
    %v1569 = vtanh.pop %v1441
    %v1570 = vtanh.pop %v1442
    %v1571 = vtanh.pop %v1443
    %v1572 = vtanh.pop %v1444
    %v1573 = vtanh.pop %v1445
    %v1574 = vtanh.pop %v1446
    %v1575 = vtanh.pop %v1447
    %v1576 = vtanh.pop %v1448
    %v1577 = vtanh.pop %v1449
    %v1578 = vtanh.pop %v1450
    %v1579 = vtanh.pop %v1451
    %v1580 = vtanh.pop %v1452
    %v1581 = vtanh.pop %v1453
    %v1582 = vtanh.pop %v1454
    %v1583 = vtanh.pop %v1455
    %v1584 = vtanh.pop %v1456
    %v1585 = vtanh.pop %v1457
    %v1586 = vtanh.pop %v1458
    %v1587 = vtanh.pop %v1459
    %v1588 = vtanh.pop %v1460
    %v1589 = vtanh.pop %v1461
    %v1590 = vtanh.pop %v1462
    %v1591 = vtanh.pop %v1463
    %v1592 = vtanh.pop %v1464
    %v1593 = vtanh.pop %v1465
    %v1594 = vtanh.pop %v1466
    %v1595 = vadd.f32 %v1467, 1.0
    %v1596 = vadd.f32 %v1468, 1.0
    %v1597 = vadd.f32 %v1469, 1.0
    %v1598 = vadd.f32 %v1470, 1.0
    %v1599 = vadd.f32 %v1471, 1.0
    %v1600 = vadd.f32 %v1472, 1.0
    %v1601 = vadd.f32 %v1473, 1.0
    %v1602 = vadd.f32 %v1474, 1.0
    %v1603 = vadd.f32 %v1475, 1.0
    %v1604 = vadd.f32 %v1476, 1.0
    %v1605 = vadd.f32 %v1477, 1.0
    %v1606 = vadd.f32 %v1478, 1.0
    %v1607 = vadd.f32 %v1479, 1.0
    %v1608 = vadd.f32 %v1480, 1.0
    %v1609 = vadd.f32 %v1481, 1.0
    %v1610 = vadd.f32 %v1482, 1.0
    %v1611 = vadd.f32 %v1483, 1.0
    %v1612 = vadd.f32 %v1484, 1.0
    %v1613 = vadd.f32 %v1485, 1.0
    %v1614 = vadd.f32 %v1486, 1.0
    %v1615 = vadd.f32 %v1487, 1.0
    %v1616 = vadd.f32 %v1488, 1.0
    %v1617 = vadd.f32 %v1489, 1.0
    %v1618 = vadd.f32 %v1490, 1.0
    %v1619 = vadd.f32 %v1491, 1.0
    %v1620 = vadd.f32 %v1492, 1.0
    %v1621 = vadd.f32 %v1493, 1.0
    %v1622 = vadd.f32 %v1494, 1.0
    %v1623 = vadd.f32 %v1495, 1.0
    %v1624 = vadd.f32 %v1496, 1.0
    %v1625 = vadd.f32 %v1497, 1.0
    %v1626 = vadd.f32 %v1498, 1.0
    %v1627 = vadd.f32 %v1499, 1.0
    %v1628 = vadd.f32 %v1500, 1.0
    %v1629 = vadd.f32 %v1501, 1.0
    %v1630 = vadd.f32 %v1502, 1.0
    %v1631 = vadd.f32 %v1503, 1.0
    %v1632 = vadd.f32 %v1504, 1.0
    %v1633 = vadd.f32 %v1505, 1.0
    %v1634 = vadd.f32 %v1506, 1.0
    %v1635 = vadd.f32 %v1507, 1.0
    %v1636 = vadd.f32 %v1508, 1.0
    %v1637 = vadd.f32 %v1509, 1.0
    %v1638 = vadd.f32 %v1510, 1.0
    %v1639 = vadd.f32 %v1511, 1.0
    %v1640 = vadd.f32 %v1512, 1.0
    %v1641 = vadd.f32 %v1513, 1.0
    %v1642 = vadd.f32 %v1514, 1.0
    %v1643 = vadd.f32 %v1515, 1.0
    %v1644 = vadd.f32 %v1516, 1.0
    %v1645 = vadd.f32 %v1517, 1.0
    %v1646 = vadd.f32 %v1518, 1.0
    %v1647 = vadd.f32 %v1519, 1.0
    %v1648 = vadd.f32 %v1520, 1.0
    %v1649 = vadd.f32 %v1521, 1.0
    %v1650 = vadd.f32 %v1522, 1.0
    %v1651 = vadd.f32 %v1523, 1.0
    %v1652 = vadd.f32 %v1524, 1.0
    %v1653 = vadd.f32 %v1525, 1.0
    %v1654 = vadd.f32 %v1526, 1.0
    %v1655 = vadd.f32 %v1527, 1.0
    %v1656 = vadd.f32 %v1528, 1.0
    %v1657 = vadd.f32 %v1529, 1.0
    %v1658 = vadd.f32 %v1530, 1.0
    %v1659 = vadd.f32 %v1531, 1.0
    %v1660 = vadd.f32 %v1532, 1.0
    %v1661 = vadd.f32 %v1533, 1.0
    %v1662 = vadd.f32 %v1534, 1.0
    %v1663 = vadd.f32 %v1535, 1.0
    %v1664 = vadd.f32 %v1536, 1.0
    %v1665 = vadd.f32 %v1537, 1.0
    %v1666 = vadd.f32 %v1538, 1.0
    %v1667 = vadd.f32 %v1539, 1.0
    %v1668 = vadd.f32 %v1540, 1.0
    %v1669 = vadd.f32 %v1541, 1.0
    %v1670 = vadd.f32 %v1542, 1.0
    %v1671 = vadd.f32 %v1543, 1.0
    %v1672 = vadd.f32 %v1544, 1.0
    %v1673 = vadd.f32 %v1545, 1.0
    %v1674 = vadd.f32 %v1546, 1.0
    %v1675 = vadd.f32 %v1547, 1.0
    %v1676 = vadd.f32 %v1548, 1.0
    %v1677 = vadd.f32 %v1549, 1.0
    %v1678 = vadd.f32 %v1550, 1.0
    %v1679 = vadd.f32 %v1551, 1.0
    %v1680 = vadd.f32 %v1552, 1.0
    %v1681 = vadd.f32 %v1553, 1.0
    %v1682 = vadd.f32 %v1554, 1.0
    %v1683 = vadd.f32 %v1555, 1.0
    %v1684 = vadd.f32 %v1556, 1.0
    %v1685 = vadd.f32 %v1557, 1.0
    %v1686 = vadd.f32 %v1558, 1.0
    %v1687 = vadd.f32 %v1559, 1.0
    %v1688 = vadd.f32 %v1560, 1.0
    %v1689 = vadd.f32 %v1561, 1.0
    %v1690 = vadd.f32 %v1562, 1.0
    %v1691 = vadd.f32 %v1563, 1.0
    %v1692 = vadd.f32 %v1564, 1.0
    %v1693 = vadd.f32 %v1565, 1.0
    %v1694 = vadd.f32 %v1566, 1.0
    %v1695 = vadd.f32 %v1567, 1.0
    %v1696 = vadd.f32 %v1568, 1.0
    %v1697 = vadd.f32 %v1569, 1.0
    %v1698 = vadd.f32 %v1570, 1.0
    %v1699 = vadd.f32 %v1571, 1.0
    %v1700 = vadd.f32 %v1572, 1.0
    %v1701 = vadd.f32 %v1573, 1.0
    %v1702 = vadd.f32 %v1574, 1.0
    %v1703 = vadd.f32 %v1575, 1.0
    %v1704 = vadd.f32 %v1576, 1.0
    %v1705 = vadd.f32 %v1577, 1.0
    %v1706 = vadd.f32 %v1578, 1.0
    %v1707 = vadd.f32 %v1579, 1.0
    %v1708 = vadd.f32 %v1580, 1.0
    %v1709 = vadd.f32 %v1581, 1.0
    %v1710 = vadd.f32 %v1582, 1.0
    %v1711 = vadd.f32 %v1583, 1.0
    %v1712 = vadd.f32 %v1584, 1.0
    %v1713 = vadd.f32 %v1585, 1.0
    %v1714 = vadd.f32 %v1586, 1.0
    %v1715 = vadd.f32 %v1587, 1.0
    %v1716 = vadd.f32 %v1588, 1.0
    %v1717 = vadd.f32 %v1589, 1.0
    %v1718 = vadd.f32 %v1590, 1.0
    %v1719 = vadd.f32 %v1591, 1.0
    %v1720 = vadd.f32 %v1592, 1.0
    %v1721 = vadd.f32 %v1593, 1.0
    %v1722 = vadd.f32 %v1594, 1.0
    %v1723 = vmul.f32 %v1595, 0.5
    %v1724 = vmul.f32 %v1596, 0.5
    %v1725 = vmul.f32 %v1597, 0.5
    %v1726 = vmul.f32 %v1598, 0.5
    %v1727 = vmul.f32 %v1599, 0.5
    %v1728 = vmul.f32 %v1600, 0.5
    %v1729 = vmul.f32 %v1601, 0.5
    %v1730 = vmul.f32 %v1602, 0.5
    %v1731 = vmul.f32 %v1603, 0.5
    %v1732 = vmul.f32 %v1604, 0.5
    %v1733 = vmul.f32 %v1605, 0.5
    %v1734 = vmul.f32 %v1606, 0.5
    %v1735 = vmul.f32 %v1607, 0.5
    %v1736 = vmul.f32 %v1608, 0.5
    %v1737 = vmul.f32 %v1609, 0.5
    %v1738 = vmul.f32 %v1610, 0.5
    %v1739 = vmul.f32 %v1611, 0.5
    %v1740 = vmul.f32 %v1612, 0.5
    %v1741 = vmul.f32 %v1613, 0.5
    %v1742 = vmul.f32 %v1614, 0.5
    %v1743 = vmul.f32 %v1615, 0.5
    %v1744 = vmul.f32 %v1616, 0.5
    %v1745 = vmul.f32 %v1617, 0.5
    %v1746 = vmul.f32 %v1618, 0.5
    %v1747 = vmul.f32 %v1619, 0.5
    %v1748 = vmul.f32 %v1620, 0.5
    %v1749 = vmul.f32 %v1621, 0.5
    %v1750 = vmul.f32 %v1622, 0.5
    %v1751 = vmul.f32 %v1623, 0.5
    %v1752 = vmul.f32 %v1624, 0.5
    %v1753 = vmul.f32 %v1625, 0.5
    %v1754 = vmul.f32 %v1626, 0.5
    %v1755 = vmul.f32 %v1627, 0.5
    %v1756 = vmul.f32 %v1628, 0.5
    %v1757 = vmul.f32 %v1629, 0.5
    %v1758 = vmul.f32 %v1630, 0.5
    %v1759 = vmul.f32 %v1631, 0.5
    %v1760 = vmul.f32 %v1632, 0.5
    %v1761 = vmul.f32 %v1633, 0.5
    %v1762 = vmul.f32 %v1634, 0.5
    %v1763 = vmul.f32 %v1635, 0.5
    %v1764 = vmul.f32 %v1636, 0.5
    %v1765 = vmul.f32 %v1637, 0.5
    %v1766 = vmul.f32 %v1638, 0.5
    %v1767 = vmul.f32 %v1639, 0.5
    %v1768 = vmul.f32 %v1640, 0.5
    %v1769 = vmul.f32 %v1641, 0.5
    %v1770 = vmul.f32 %v1642, 0.5
    %v1771 = vmul.f32 %v1643, 0.5
    %v1772 = vmul.f32 %v1644, 0.5
    %v1773 = vmul.f32 %v1645, 0.5
    %v1774 = vmul.f32 %v1646, 0.5
    %v1775 = vmul.f32 %v1647, 0.5
    %v1776 = vmul.f32 %v1648, 0.5
    %v1777 = vmul.f32 %v1649, 0.5
    %v1778 = vmul.f32 %v1650, 0.5
    %v1779 = vmul.f32 %v1651, 0.5
    %v1780 = vmul.f32 %v1652, 0.5
    %v1781 = vmul.f32 %v1653, 0.5
    %v1782 = vmul.f32 %v1654, 0.5
    %v1783 = vmul.f32 %v1655, 0.5
    %v1784 = vmul.f32 %v1656, 0.5
    %v1785 = vmul.f32 %v1657, 0.5
    %v1786 = vmul.f32 %v1658, 0.5
    %v1787 = vmul.f32 %v1659, 0.5
    %v1788 = vmul.f32 %v1660, 0.5
    %v1789 = vmul.f32 %v1661, 0.5
    %v1790 = vmul.f32 %v1662, 0.5
    %v1791 = vmul.f32 %v1663, 0.5
    %v1792 = vmul.f32 %v1664, 0.5
    %v1793 = vmul.f32 %v1665, 0.5
    %v1794 = vmul.f32 %v1666, 0.5
    %v1795 = vmul.f32 %v1667, 0.5
    %v1796 = vmul.f32 %v1668, 0.5
    %v1797 = vmul.f32 %v1669, 0.5
    %v1798 = vmul.f32 %v1670, 0.5
    %v1799 = vmul.f32 %v1671, 0.5
    %v1800 = vmul.f32 %v1672, 0.5
    %v1801 = vmul.f32 %v1673, 0.5
    %v1802 = vmul.f32 %v1674, 0.5
    %v1803 = vmul.f32 %v1675, 0.5
    %v1804 = vmul.f32 %v1676, 0.5
    %v1805 = vmul.f32 %v1677, 0.5
    %v1806 = vmul.f32 %v1678, 0.5
    %v1807 = vmul.f32 %v1679, 0.5
    %v1808 = vmul.f32 %v1680, 0.5
    %v1809 = vmul.f32 %v1681, 0.5
    %v1810 = vmul.f32 %v1682, 0.5
    %v1811 = vmul.f32 %v1683, 0.5
    %v1812 = vmul.f32 %v1684, 0.5
    %v1813 = vmul.f32 %v1685, 0.5
    %v1814 = vmul.f32 %v1686, 0.5
    %v1815 = vmul.f32 %v1687, 0.5
    %v1816 = vmul.f32 %v1688, 0.5
    %v1817 = vmul.f32 %v1689, 0.5
    %v1818 = vmul.f32 %v1690, 0.5
    %v1819 = vmul.f32 %v1691, 0.5
    %v1820 = vmul.f32 %v1692, 0.5
    %v1821 = vmul.f32 %v1693, 0.5
    %v1822 = vmul.f32 %v1694, 0.5
    %v1823 = vmul.f32 %v1695, 0.5
    %v1824 = vmul.f32 %v1696, 0.5
    %v1825 = vmul.f32 %v1697, 0.5
    %v1826 = vmul.f32 %v1698, 0.5
    %v1827 = vmul.f32 %v1699, 0.5
    %v1828 = vmul.f32 %v1700, 0.5
    %v1829 = vmul.f32 %v1701, 0.5
    %v1830 = vmul.f32 %v1702, 0.5
    %v1831 = vmul.f32 %v1703, 0.5
    %v1832 = vmul.f32 %v1704, 0.5
    %v1833 = vmul.f32 %v1705, 0.5
    %v1834 = vmul.f32 %v1706, 0.5
    %v1835 = vmul.f32 %v1707, 0.5
    %v1836 = vmul.f32 %v1708, 0.5
    %v1837 = vmul.f32 %v1709, 0.5
    %v1838 = vmul.f32 %v1710, 0.5
    %v1839 = vmul.f32 %v1711, 0.5
    %v1840 = vmul.f32 %v1712, 0.5
    %v1841 = vmul.f32 %v1713, 0.5
    %v1842 = vmul.f32 %v1714, 0.5
    %v1843 = vmul.f32 %v1715, 0.5
    %v1844 = vmul.f32 %v1716, 0.5
    %v1845 = vmul.f32 %v1717, 0.5
    %v1846 = vmul.f32 %v1718, 0.5
    %v1847 = vmul.f32 %v1719, 0.5
    %v1848 = vmul.f32 %v1720, 0.5
    %v1849 = vmul.f32 %v1721, 0.5
    %v1850 = vmul.f32 %v1722, 0.5
    %v1851 = vmul.f32 %v476, %v1723
    %v1852 = vmul.f32 %v478, %v1724
    %v1853 = vmul.f32 %v669, %v1725
    %v1854 = vmul.f32 %v671, %v1726
    %v1855 = vmul.f32 %v480, %v1727
    %v1856 = vmul.f32 %v482, %v1728
    %v1857 = vmul.f32 %v673, %v1729
    %v1858 = vmul.f32 %v675, %v1730
    %v1859 = vmul.f32 %v486, %v1731
    %v1860 = vmul.f32 %v488, %v1732
    %v1861 = vmul.f32 %v679, %v1733
    %v1862 = vmul.f32 %v681, %v1734
    %v1863 = vmul.f32 %v490, %v1735
    %v1864 = vmul.f32 %v492, %v1736
    %v1865 = vmul.f32 %v683, %v1737
    %v1866 = vmul.f32 %v685, %v1738
    %v1867 = vmul.f32 %v496, %v1739
    %v1868 = vmul.f32 %v498, %v1740
    %v1869 = vmul.f32 %v689, %v1741
    %v1870 = vmul.f32 %v691, %v1742
    %v1871 = vmul.f32 %v500, %v1743
    %v1872 = vmul.f32 %v502, %v1744
    %v1873 = vmul.f32 %v693, %v1745
    %v1874 = vmul.f32 %v695, %v1746
    %v1875 = vmul.f32 %v506, %v1747
    %v1876 = vmul.f32 %v508, %v1748
    %v1877 = vmul.f32 %v699, %v1749
    %v1878 = vmul.f32 %v701, %v1750
    %v1879 = vmul.f32 %v510, %v1751
    %v1880 = vmul.f32 %v512, %v1752
    %v1881 = vmul.f32 %v703, %v1753
    %v1882 = vmul.f32 %v705, %v1754
    %v1883 = vmul.f32 %v516, %v1755
    %v1884 = vmul.f32 %v518, %v1756
    %v1885 = vmul.f32 %v709, %v1757
    %v1886 = vmul.f32 %v711, %v1758
    %v1887 = vmul.f32 %v520, %v1759
    %v1888 = vmul.f32 %v522, %v1760
    %v1889 = vmul.f32 %v713, %v1761
    %v1890 = vmul.f32 %v715, %v1762
    %v1891 = vmul.f32 %v526, %v1763
    %v1892 = vmul.f32 %v528, %v1764
    %v1893 = vmul.f32 %v719, %v1765
    %v1894 = vmul.f32 %v721, %v1766
    %v1895 = vmul.f32 %v530, %v1767
    %v1896 = vmul.f32 %v532, %v1768
    %v1897 = vmul.f32 %v723, %v1769
    %v1898 = vmul.f32 %v725, %v1770
    %v1899 = vmul.f32 %v536, %v1771
    %v1900 = vmul.f32 %v538, %v1772
    %v1901 = vmul.f32 %v729, %v1773
    %v1902 = vmul.f32 %v731, %v1774
    %v1903 = vmul.f32 %v540, %v1775
    %v1904 = vmul.f32 %v542, %v1776
    %v1905 = vmul.f32 %v733, %v1777
    %v1906 = vmul.f32 %v735, %v1778
    %v1907 = vmul.f32 %v546, %v1779
    %v1908 = vmul.f32 %v548, %v1780
    %v1909 = vmul.f32 %v739, %v1781
    %v1910 = vmul.f32 %v741, %v1782
    %v1911 = vmul.f32 %v550, %v1783
    %v1912 = vmul.f32 %v552, %v1784
    %v1913 = vmul.f32 %v743, %v1785
    %v1914 = vmul.f32 %v745, %v1786
    %v1915 = vmul.f32 %v556, %v1787
    %v1916 = vmul.f32 %v558, %v1788
    %v1917 = vmul.f32 %v749, %v1789
    %v1918 = vmul.f32 %v751, %v1790
    %v1919 = vmul.f32 %v560, %v1791
    %v1920 = vmul.f32 %v562, %v1792
    %v1921 = vmul.f32 %v753, %v1793
    %v1922 = vmul.f32 %v755, %v1794
    %v1923 = vmul.f32 %v566, %v1795
    %v1924 = vmul.f32 %v568, %v1796
    %v1925 = vmul.f32 %v759, %v1797
    %v1926 = vmul.f32 %v761, %v1798
    %v1927 = vmul.f32 %v570, %v1799
    %v1928 = vmul.f32 %v572, %v1800
    %v1929 = vmul.f32 %v763, %v1801
    %v1930 = vmul.f32 %v765, %v1802
    %v1931 = vmul.f32 %v576, %v1803
    %v1932 = vmul.f32 %v578, %v1804
    %v1933 = vmul.f32 %v769, %v1805
    %v1934 = vmul.f32 %v771, %v1806
    %v1935 = vmul.f32 %v580, %v1807
    %v1936 = vmul.f32 %v582, %v1808
    %v1937 = vmul.f32 %v773, %v1809
    %v1938 = vmul.f32 %v775, %v1810
    %v1939 = vmul.f32 %v586, %v1811
    %v1940 = vmul.f32 %v588, %v1812
    %v1941 = vmul.f32 %v779, %v1813
    %v1942 = vmul.f32 %v781, %v1814
    %v1943 = vmul.f32 %v590, %v1815
    %v1944 = vmul.f32 %v592, %v1816
    %v1945 = vmul.f32 %v783, %v1817
    %v1946 = vmul.f32 %v785, %v1818
    %v1947 = vmul.f32 %v596, %v1819
    %v1948 = vmul.f32 %v598, %v1820
    %v1949 = vmul.f32 %v789, %v1821
    %v1950 = vmul.f32 %v791, %v1822
    %v1951 = vmul.f32 %v600, %v1823
    %v1952 = vmul.f32 %v602, %v1824
    %v1953 = vmul.f32 %v793, %v1825
    %v1954 = vmul.f32 %v795, %v1826
    %v1955 = vmul.f32 %v606, %v1827
    %v1956 = vmul.f32 %v608, %v1828
    %v1957 = vmul.f32 %v799, %v1829
    %v1958 = vmul.f32 %v801, %v1830
    %v1959 = vmul.f32 %v610, %v1831
    %v1960 = vmul.f32 %v612, %v1832
    %v1961 = vmul.f32 %v803, %v1833
    %v1962 = vmul.f32 %v805, %v1834
    %v1963 = vmul.f32 %v616, %v1835
    %v1964 = vmul.f32 %v618, %v1836
    %v1965 = vmul.f32 %v809, %v1837
    %v1966 = vmul.f32 %v811, %v1838
    %v1967 = vmul.f32 %v620, %v1839
    %v1968 = vmul.f32 %v622, %v1840
    %v1969 = vmul.f32 %v813, %v1841
    %v1970 = vmul.f32 %v815, %v1842
    %v1971 = vmul.f32 %v626, %v1843
    %v1972 = vmul.f32 %v628, %v1844
    %v1973 = vmul.f32 %v819, %v1845
    %v1974 = vmul.f32 %v821, %v1846
    %v1975 = vmul.f32 %v630, %v1847
    %v1976 = vmul.f32 %v632, %v1848
    %v1977 = vmul.f32 %v823, %v1849
    %v1978 = vmul.f32 %v825, %v1850
    %v1979 = vpack.c.bf16 %v1855, %v1851
    %v1980 = vpack.c.bf16 %v1856, %v1852
    %v1981 = vpack.c.bf16 %v1857, %v1853
    %v1982 = vpack.c.bf16 %v1858, %v1854
    %v1983 = vpack.c.bf16 %v1863, %v1859
    %v1984 = vpack.c.bf16 %v1864, %v1860
    %v1985 = vpack.c.bf16 %v1865, %v1861
    %v1986 = vpack.c.bf16 %v1866, %v1862
    %v1987 = vpack.c.bf16 %v1871, %v1867
    %v1988 = vpack.c.bf16 %v1872, %v1868
    %v1989 = vpack.c.bf16 %v1873, %v1869
    %v1990 = vpack.c.bf16 %v1874, %v1870
    %v1991 = vpack.c.bf16 %v1879, %v1875
    %v1992 = vpack.c.bf16 %v1880, %v1876
    %v1993 = vpack.c.bf16 %v1881, %v1877
    %v1994 = vpack.c.bf16 %v1882, %v1878
    %v1995 = vpack.c.bf16 %v1887, %v1883
    %v1996 = vpack.c.bf16 %v1888, %v1884
    %v1997 = vpack.c.bf16 %v1889, %v1885
    %v1998 = vpack.c.bf16 %v1890, %v1886
    %v1999 = vpack.c.bf16 %v1895, %v1891
    %v2000 = vpack.c.bf16 %v1896, %v1892
    %v2001 = vpack.c.bf16 %v1897, %v1893
    %v2002 = vpack.c.bf16 %v1898, %v1894
    %v2003 = vpack.c.bf16 %v1903, %v1899
    %v2004 = vpack.c.bf16 %v1904, %v1900
    %v2005 = vpack.c.bf16 %v1905, %v1901
    %v2006 = vpack.c.bf16 %v1906, %v1902
    %v2007 = vpack.c.bf16 %v1911, %v1907
    %v2008 = vpack.c.bf16 %v1912, %v1908
    %v2009 = vpack.c.bf16 %v1913, %v1909
    %v2010 = vpack.c.bf16 %v1914, %v1910
    %v2011 = vpack.c.bf16 %v1919, %v1915
    %v2012 = vpack.c.bf16 %v1920, %v1916
    %v2013 = vpack.c.bf16 %v1921, %v1917
    %v2014 = vpack.c.bf16 %v1922, %v1918
    %v2015 = vpack.c.bf16 %v1927, %v1923
    %v2016 = vpack.c.bf16 %v1928, %v1924
    %v2017 = vpack.c.bf16 %v1929, %v1925
    %v2018 = vpack.c.bf16 %v1930, %v1926
    %v2019 = vpack.c.bf16 %v1935, %v1931
    %v2020 = vpack.c.bf16 %v1936, %v1932
    %v2021 = vpack.c.bf16 %v1937, %v1933
    %v2022 = vpack.c.bf16 %v1938, %v1934
    %v2023 = vpack.c.bf16 %v1943, %v1939
    %v2024 = vpack.c.bf16 %v1944, %v1940
    %v2025 = vpack.c.bf16 %v1945, %v1941
    %v2026 = vpack.c.bf16 %v1946, %v1942
    %v2027 = vpack.c.bf16 %v1951, %v1947
    %v2028 = vpack.c.bf16 %v1952, %v1948
    %v2029 = vpack.c.bf16 %v1953, %v1949
    %v2030 = vpack.c.bf16 %v1954, %v1950
    %v2031 = vpack.c.bf16 %v1959, %v1955
    %v2032 = vpack.c.bf16 %v1960, %v1956
    %v2033 = vpack.c.bf16 %v1961, %v1957
    %v2034 = vpack.c.bf16 %v1962, %v1958
    %v2035 = vpack.c.bf16 %v1967, %v1963
    %v2036 = vpack.c.bf16 %v1968, %v1964
    %v2037 = vpack.c.bf16 %v1969, %v1965
    %v2038 = vpack.c.bf16 %v1970, %v1966
    %v2039 = vpack.c.bf16 %v1975, %v1971
    %v2040 = vpack.c.bf16 %v1976, %v1972
    %v2041 = vpack.c.bf16 %v1977, %v1973
    %v2042 = vpack.c.bf16 %v1978, %v1974
    %v2043 = vld [vmem:[#allocation2] sm:$0xff]
    %v2044 = vld [vmem:[#allocation2 + $0x8] sm:$0xff]
    %v2045 = vld [vmem:[#allocation2 + $0x10] sm:$0xff]
    %v2046 = vld [vmem:[#allocation2 + $0x18] sm:$0xff]
    %v2047 = vld [vmem:[#allocation2 + $0x20] sm:$0xff]
    %v2048 = vld [vmem:[#allocation2 + $0x28] sm:$0xff]
    %v2049 = vld [vmem:[#allocation2 + $0x30] sm:$0xff]
    %v2050 = vld [vmem:[#allocation2 + $0x38] sm:$0xff]
    %v2051 = vld [vmem:[#allocation2 + $0x40] sm:$0xff]
    %v2052 = vld [vmem:[#allocation2 + $0x48] sm:$0xff]
    %v2053 = vld [vmem:[#allocation2 + $0x50] sm:$0xff]
    %v2054 = vld [vmem:[#allocation2 + $0x58] sm:$0xff]
    %v2055 = vld [vmem:[#allocation2 + $0x60] sm:$0xff]
    %v2056 = vld [vmem:[#allocation2 + $0x68] sm:$0xff]
    %v2057 = vld [vmem:[#allocation2 + $0x70] sm:$0xff]
    %v2058 = vld [vmem:[#allocation2 + $0x78] sm:$0xff]
    %v2059 = vld [vmem:[#allocation2 + $0x80] sm:$0xff]
    %v2060 = vld [vmem:[#allocation2 + $0x88] sm:$0xff]
    %v2061 = vld [vmem:[#allocation2 + $0x90] sm:$0xff]
    %v2062 = vld [vmem:[#allocation2 + $0x98] sm:$0xff]
    %v2063 = vld [vmem:[#allocation2 + $0xa0] sm:$0xff]
    %v2064 = vld [vmem:[#allocation2 + $0xa8] sm:$0xff]
    %v2065 = vld [vmem:[#allocation2 + $0xb0] sm:$0xff]
    %v2066 = vld [vmem:[#allocation2 + $0xb8] sm:$0xff]
    %v2067 = vld [vmem:[#allocation2 + $0xc0] sm:$0xff]
    %v2068 = vld [vmem:[#allocation2 + $0xc8] sm:$0xff]
    %v2069 = vld [vmem:[#allocation2 + $0xd0] sm:$0xff]
    %v2070 = vld [vmem:[#allocation2 + $0xd8] sm:$0xff]
    %v2071 = vld [vmem:[#allocation2 + $0xe0] sm:$0xff]
    %v2072 = vld [vmem:[#allocation2 + $0xe8] sm:$0xff]
    %v2073 = vld [vmem:[#allocation2 + $0xf0] sm:$0xff]
    %v2074 = vld [vmem:[#allocation2 + $0xf8] sm:$0xff]
    %v2075 = vld [vmem:[#allocation8] sm:$0xf]
    %v2076 = vld [vmem:[#allocation8 + $0x4] sm:$0xf]
    %v2077 = vld [vmem:[#allocation8 + $0x8] sm:$0xf]
    %v2078 = vld [vmem:[#allocation8 + $0xc] sm:$0xf]
    %v2079 = vld [vmem:[#allocation8 + $0x10] sm:$0xf]
    %v2080 = vld [vmem:[#allocation8 + $0x14] sm:$0xf]
    %v2081 = vld [vmem:[#allocation8 + $0x18] sm:$0xf]
    %v2082 = vld [vmem:[#allocation8 + $0x1c] sm:$0xf]
    %v2083 = vld [vmem:[#allocation8 + $0x20] sm:$0xf]
    %v2084 = vld [vmem:[#allocation8 + $0x24] sm:$0xf]
    %v2085 = vld [vmem:[#allocation8 + $0x28] sm:$0xf]
    %v2086 = vld [vmem:[#allocation8 + $0x2c] sm:$0xf]
    %v2087 = vld [vmem:[#allocation8 + $0x30] sm:$0xf]
    %v2088 = vld [vmem:[#allocation8 + $0x34] sm:$0xf]
    %v2089 = vld [vmem:[#allocation8 + $0x38] sm:$0xf]
    %v2090 = vld [vmem:[#allocation8 + $0x3c] sm:$0xf]
    %v2091 = vld [vmem:[#allocation8 + $0x40] sm:$0xf]
    %v2092 = vld [vmem:[#allocation8 + $0x44] sm:$0xf]
    %v2093 = vld [vmem:[#allocation8 + $0x48] sm:$0xf]
    %v2094 = vld [vmem:[#allocation8 + $0x4c] sm:$0xf]
    %v2095 = vld [vmem:[#allocation8 + $0x50] sm:$0xf]
    %v2096 = vld [vmem:[#allocation8 + $0x54] sm:$0xf]
    %v2097 = vld [vmem:[#allocation8 + $0x58] sm:$0xf]
    %v2098 = vld [vmem:[#allocation8 + $0x5c] sm:$0xf]
    %v2099 = vld [vmem:[#allocation8 + $0x60] sm:$0xf]
    %v2100 = vld [vmem:[#allocation8 + $0x64] sm:$0xf]
    %v2101 = vld [vmem:[#allocation8 + $0x68] sm:$0xf]
    %v2102 = vld [vmem:[#allocation8 + $0x6c] sm:$0xf]
    %v2103 = vld [vmem:[#allocation8 + $0x70] sm:$0xf]
    %v2104 = vld [vmem:[#allocation8 + $0x74] sm:$0xf]
    %v2105 = vld [vmem:[#allocation8 + $0x78] sm:$0xf]
    %v2106 = vld [vmem:[#allocation8 + $0x7c] sm:$0xf]
    %v2107 = vld [vmem:[#allocation8 + $0x80] sm:$0xf]
    %v2108 = vld [vmem:[#allocation8 + $0x84] sm:$0xf]
    %v2109 = vld [vmem:[#allocation8 + $0x88] sm:$0xf]
    %v2110 = vld [vmem:[#allocation8 + $0x8c] sm:$0xf]
    %v2111 = vld [vmem:[#allocation8 + $0x90] sm:$0xf]
    %v2112 = vld [vmem:[#allocation8 + $0x94] sm:$0xf]
    %v2113 = vld [vmem:[#allocation8 + $0x98] sm:$0xf]
    %v2114 = vld [vmem:[#allocation8 + $0x9c] sm:$0xf]
    %v2115 = vld [vmem:[#allocation8 + $0xa0] sm:$0xf]
    %v2116 = vld [vmem:[#allocation8 + $0xa4] sm:$0xf]
    %v2117 = vld [vmem:[#allocation8 + $0xa8] sm:$0xf]
    %v2118 = vld [vmem:[#allocation8 + $0xac] sm:$0xf]
    %v2119 = vld [vmem:[#allocation8 + $0xb0] sm:$0xf]
    %v2120 = vld [vmem:[#allocation8 + $0xb4] sm:$0xf]
    %v2121 = vld [vmem:[#allocation8 + $0xb8] sm:$0xf]
    %v2122 = vld [vmem:[#allocation8 + $0xbc] sm:$0xf]
    %v2123 = vld [vmem:[#allocation8 + $0xc0] sm:$0xf]
    %v2124 = vld [vmem:[#allocation8 + $0xc4] sm:$0xf]
    %v2125 = vld [vmem:[#allocation8 + $0xc8] sm:$0xf]
    %v2126 = vld [vmem:[#allocation8 + $0xcc] sm:$0xf]
    %v2127 = vld [vmem:[#allocation8 + $0xd0] sm:$0xf]
    %v2128 = vld [vmem:[#allocation8 + $0xd4] sm:$0xf]
    %v2129 = vld [vmem:[#allocation8 + $0xd8] sm:$0xf]
    %v2130 = vld [vmem:[#allocation8 + $0xdc] sm:$0xf]
    %v2131 = vld [vmem:[#allocation8 + $0xe0] sm:$0xf]
    %v2132 = vld [vmem:[#allocation8 + $0xe4] sm:$0xf]
    %v2133 = vld [vmem:[#allocation8 + $0xe8] sm:$0xf]
    %v2134 = vld [vmem:[#allocation8 + $0xec] sm:$0xf]
    %v2135 = vld [vmem:[#allocation8 + $0xf0] sm:$0xf]
    %v2136 = vld [vmem:[#allocation8 + $0xf4] sm:$0xf]
    %v2137 = vld [vmem:[#allocation8 + $0xf8] sm:$0xf]
    %v2138 = vld [vmem:[#allocation8 + $0xfc] sm:$0xf]
    %v2203 = vunpack.c.l.b16 %v2075
    %v2204 = vunpack.c.l.b16 %v2076
    %v2205 = vunpack.c.l.b16 %v2077
    %v2206 = vunpack.c.l.b16 %v2078
    %v2207 = vunpack.c.l.b16 %v2079
    %v2208 = vunpack.c.l.b16 %v2080
    %v2209 = vunpack.c.l.b16 %v2081
    %v2210 = vunpack.c.l.b16 %v2082
    %v2211 = vunpack.c.l.b16 %v2083
    %v2212 = vunpack.c.l.b16 %v2084
    %v2213 = vunpack.c.l.b16 %v2085
    %v2214 = vunpack.c.l.b16 %v2086
    %v2215 = vunpack.c.l.b16 %v2087
    %v2216 = vunpack.c.l.b16 %v2088
    %v2217 = vunpack.c.l.b16 %v2089
    %v2218 = vunpack.c.l.b16 %v2090
    %v2219 = vunpack.c.l.b16 %v2091
    %v2220 = vunpack.c.l.b16 %v2092
    %v2221 = vunpack.c.l.b16 %v2093
    %v2222 = vunpack.c.l.b16 %v2094
    %v2223 = vunpack.c.l.b16 %v2095
    %v2224 = vunpack.c.l.b16 %v2096
    %v2225 = vunpack.c.l.b16 %v2097
    %v2226 = vunpack.c.l.b16 %v2098
    %v2227 = vunpack.c.l.b16 %v2099
    %v2228 = vunpack.c.l.b16 %v2100
    %v2229 = vunpack.c.l.b16 %v2101
    %v2230 = vunpack.c.l.b16 %v2102
    %v2231 = vunpack.c.l.b16 %v2103
    %v2232 = vunpack.c.l.b16 %v2104
    %v2233 = vunpack.c.l.b16 %v2105
    %v2234 = vunpack.c.l.b16 %v2106
    %v2235 = vunpack.c.l.b16 %v2107
    %v2236 = vunpack.c.l.b16 %v2108
    %v2237 = vunpack.c.l.b16 %v2109
    %v2238 = vunpack.c.l.b16 %v2110
    %v2239 = vunpack.c.l.b16 %v2111
    %v2240 = vunpack.c.l.b16 %v2112
    %v2241 = vunpack.c.l.b16 %v2113
    %v2242 = vunpack.c.l.b16 %v2114
    %v2243 = vunpack.c.l.b16 %v2115
    %v2244 = vunpack.c.l.b16 %v2116
    %v2245 = vunpack.c.l.b16 %v2117
    %v2246 = vunpack.c.l.b16 %v2118
    %v2247 = vunpack.c.l.b16 %v2119
    %v2248 = vunpack.c.l.b16 %v2120
    %v2249 = vunpack.c.l.b16 %v2121
    %v2250 = vunpack.c.l.b16 %v2122
    %v2251 = vunpack.c.l.b16 %v2123
    %v2252 = vunpack.c.l.b16 %v2124
    %v2253 = vunpack.c.l.b16 %v2125
    %v2254 = vunpack.c.l.b16 %v2126
    %v2255 = vunpack.c.l.b16 %v2127
    %v2256 = vunpack.c.l.b16 %v2128
    %v2257 = vunpack.c.l.b16 %v2129
    %v2258 = vunpack.c.l.b16 %v2130
    %v2259 = vunpack.c.l.b16 %v2131
    %v2260 = vunpack.c.l.b16 %v2132
    %v2261 = vunpack.c.l.b16 %v2133
    %v2262 = vunpack.c.l.b16 %v2134
    %v2263 = vunpack.c.l.b16 %v2135
    %v2264 = vunpack.c.l.b16 %v2136
    %v2265 = vunpack.c.l.b16 %v2137
    %v2266 = vunpack.c.l.b16 %v2138
    %v2267 = vpack.c.b16 %v2204, %v2203
    %v2268 = vpack.c.b16 %v2206, %v2205
    %v2269 = vpack.c.b16 %v2208, %v2207
    %v2270 = vpack.c.b16 %v2210, %v2209
    %v2271 = vpack.c.b16 %v2212, %v2211
    %v2272 = vpack.c.b16 %v2214, %v2213
    %v2273 = vpack.c.b16 %v2216, %v2215
    %v2274 = vpack.c.b16 %v2218, %v2217
    %v2275 = vpack.c.b16 %v2220, %v2219
    %v2276 = vpack.c.b16 %v2222, %v2221
    %v2277 = vpack.c.b16 %v2224, %v2223
    %v2278 = vpack.c.b16 %v2226, %v2225
    %v2279 = vpack.c.b16 %v2228, %v2227
    %v2280 = vpack.c.b16 %v2230, %v2229
    %v2281 = vpack.c.b16 %v2232, %v2231
    %v2282 = vpack.c.b16 %v2234, %v2233
    %v2283 = vpack.c.b16 %v2236, %v2235
    %v2284 = vpack.c.b16 %v2238, %v2237
    %v2285 = vpack.c.b16 %v2240, %v2239
    %v2286 = vpack.c.b16 %v2242, %v2241
    %v2287 = vpack.c.b16 %v2244, %v2243
    %v2288 = vpack.c.b16 %v2246, %v2245
    %v2289 = vpack.c.b16 %v2248, %v2247
    %v2290 = vpack.c.b16 %v2250, %v2249
    %v2291 = vpack.c.b16 %v2252, %v2251
    %v2292 = vpack.c.b16 %v2254, %v2253
    %v2293 = vpack.c.b16 %v2256, %v2255
    %v2294 = vpack.c.b16 %v2258, %v2257
    %v2295 = vpack.c.b16 %v2260, %v2259
    %v2296 = vpack.c.b16 %v2262, %v2261
    %v2297 = vpack.c.b16 %v2264, %v2263
    %v2298 = vpack.c.b16 %v2266, %v2265
    %2331 = vmatprep.subr.bf16.mxu0 0
    %2332 = vmatpush1.bf16.msra.mxu0 %v2267
    %2333 = vmatprep.subr.bf16.mxu0 0
    %2334 = vmatpush1.bf16.msra.mxu0 %v2268
    %2335 = vmatprep.subr.bf16.mxu0 0
    %2336 = vmatpush1.bf16.msra.mxu0 %v2269
    %2337 = vmatprep.subr.bf16.mxu0 0
    %2338 = vmatpush1.bf16.msra.mxu0 %v2270
    %2339 = vmatprep.subr.bf16.mxu0 0
    %2340 = vmatpush1.bf16.msra.mxu0 %v2271
    %2341 = vmatprep.subr.bf16.mxu0 0
    %2342 = vmatpush1.bf16.msra.mxu0 %v2272
    %2343 = vmatprep.subr.bf16.mxu0 0
    %2344 = vmatpush1.bf16.msra.mxu0 %v2273
    %2345 = vmatprep.subr.bf16.mxu0 0
    %2346 = vmatpush1.bf16.msra.mxu0 %v2274
    %2347 = vmatprep.subr.bf16.mxu0 0
    %2348 = vmatpush1.bf16.msra.mxu0 %v2275
    %2349 = vmatprep.subr.bf16.mxu0 0
    %2350 = vmatpush1.bf16.msra.mxu0 %v2276
    %2351 = vmatprep.subr.bf16.mxu0 0
    %2352 = vmatpush1.bf16.msra.mxu0 %v2277
    %2353 = vmatprep.subr.bf16.mxu0 0
    %2354 = vmatpush1.bf16.msra.mxu0 %v2278
    %2355 = vmatprep.subr.bf16.mxu0 0
    %2356 = vmatpush1.bf16.msra.mxu0 %v2279
    %2357 = vmatprep.subr.bf16.mxu0 0
    %2358 = vmatpush1.bf16.msra.mxu0 %v2280
    %2359 = vmatprep.subr.bf16.mxu0 0
    %2360 = vmatpush1.bf16.msra.mxu0 %v2281
    %2361 = vmatprep.subr.bf16.mxu0 0
    %2362 = vmatpush1.bf16.msra.mxu0 %v2282
    %2363 = vmatprep.mubr.bf16.mxu0 %v1980
    %2364 = vmatmul.mubr.bf16.gmra.mrb[0].mxu0 %v1979
    %v2365 = vpop.f32.mrb[0].mxu0
    %v2366 = vadd.f32 0.0, %v2365
    %v2367 = vpop.f32.mrb[0].mxu0
    %v2368 = vpop.f32.mrb[0].mxu0
    %v2369 = vadd.f32 0.0, %v2368
    %v2370 = vpop.f32.mrb[0].mxu0
    %2371 = vmatprep.mubr.bf16.mxu0 %v1984
    %2372 = vmatmul.mubr.bf16.gmra.mrb[0].mxu0 %v1983
    %v2373 = vpop.f32.mrb[0].mxu0
    %v2374 = vadd.f32 0.0, %v2373
    %v2375 = vpop.f32.mrb[0].mxu0
    %v2376 = vpop.f32.mrb[0].mxu0
    %v2377 = vadd.f32 0.0, %v2376
    %v2378 = vpop.f32.mrb[0].mxu0
    %2379 = vmatprep.mubr.bf16.mxu0 %v1988
    %2380 = vmatmul.mubr.bf16.gmra.mrb[0].mxu0 %v1987
    %v2381 = vpop.f32.mrb[0].mxu0
    %v2382 = vadd.f32 0.0, %v2381
    %v2383 = vpop.f32.mrb[0].mxu0
    %v2384 = vpop.f32.mrb[0].mxu0
    %v2385 = vadd.f32 0.0, %v2384
    %v2386 = vpop.f32.mrb[0].mxu0
    %2387 = vmatprep.mubr.bf16.mxu0 %v1992
    %2388 = vmatmul.mubr.bf16.gmra.mrb[0].mxu0 %v1991
    %v2389 = vpop.f32.mrb[0].mxu0
    %v2390 = vadd.f32 0.0, %v2389
    %v2391 = vpop.f32.mrb[0].mxu0
    %v2392 = vpop.f32.mrb[0].mxu0
    %v2393 = vadd.f32 0.0, %v2392
    %v2394 = vpop.f32.mrb[0].mxu0
    %2395 = vmatprep.mubr.bf16.mxu0 %v1996
    %2396 = vmatmul.mubr.bf16.gmra.mrb[0].mxu0 %v1995
    %v2397 = vpop.f32.mrb[0].mxu0
    %v2398 = vadd.f32 0.0, %v2397
    %v2399 = vpop.f32.mrb[0].mxu0
    %v2400 = vpop.f32.mrb[0].mxu0
    %v2401 = vadd.f32 0.0, %v2400
    %v2402 = vpop.f32.mrb[0].mxu0
    %2403 = vmatprep.mubr.bf16.mxu0 %v2000
    %2404 = vmatmul.mubr.bf16.gmra.mrb[0].mxu0 %v1999
    %v2405 = vpop.f32.mrb[0].mxu0
    %v2406 = vadd.f32 0.0, %v2405
    %v2407 = vpop.f32.mrb[0].mxu0
    %v2408 = vpop.f32.mrb[0].mxu0
    %v2409 = vadd.f32 0.0, %v2408
    %v2410 = vpop.f32.mrb[0].mxu0
    %2411 = vmatprep.mubr.bf16.mxu0 %v2004
    %2412 = vmatmul.mubr.bf16.gmra.mrb[0].mxu0 %v2003
    %v2413 = vpop.f32.mrb[0].mxu0
    %v2414 = vadd.f32 0.0, %v2413
    %v2415 = vpop.f32.mrb[0].mxu0
    %v2416 = vpop.f32.mrb[0].mxu0
    %v2417 = vadd.f32 0.0, %v2416
    %v2418 = vpop.f32.mrb[0].mxu0
    %2419 = vmatprep.mubr.bf16.mxu0 %v2008
    %2420 = vmatmul.mubr.bf16.gmra.mrb[0].mxu0 %v2007
    %v2421 = vpop.f32.mrb[0].mxu0
    %v2422 = vadd.f32 0.0, %v2421
    %v2423 = vpop.f32.mrb[0].mxu0
    %v2424 = vpop.f32.mrb[0].mxu0
    %v2425 = vadd.f32 0.0, %v2424
    %v2426 = vpop.f32.mrb[0].mxu0
    %2427 = vmatprep.mubr.bf16.mxu0 %v2012
    %2428 = vmatmul.mubr.bf16.gmra.mrb[0].mxu0 %v2011
    %v2429 = vpop.f32.mrb[0].mxu0
    %v2430 = vadd.f32 0.0, %v2429
    %v2431 = vpop.f32.mrb[0].mxu0
    %v2432 = vpop.f32.mrb[0].mxu0
    %v2433 = vadd.f32 0.0, %v2432
    %v2434 = vpop.f32.mrb[0].mxu0
    %2435 = vmatprep.mubr.bf16.mxu0 %v2016
    %2436 = vmatmul.mubr.bf16.gmra.mrb[0].mxu0 %v2015
    %v2437 = vpop.f32.mrb[0].mxu0
    %v2438 = vadd.f32 0.0, %v2437
    %v2439 = vpop.f32.mrb[0].mxu0
    %v2440 = vpop.f32.mrb[0].mxu0
    %v2441 = vadd.f32 0.0, %v2440
    %v2442 = vpop.f32.mrb[0].mxu0
    %2443 = vmatprep.mubr.bf16.mxu0 %v2020
    %2444 = vmatmul.mubr.bf16.gmra.mrb[0].mxu0 %v2019
    %v2445 = vpop.f32.mrb[0].mxu0
    %v2446 = vadd.f32 0.0, %v2445
    %v2447 = vpop.f32.mrb[0].mxu0
    %v2448 = vpop.f32.mrb[0].mxu0
    %v2449 = vadd.f32 0.0, %v2448
    %v2450 = vpop.f32.mrb[0].mxu0
    %2451 = vmatprep.mubr.bf16.mxu0 %v2024
    %2452 = vmatmul.mubr.bf16.gmra.mrb[0].mxu0 %v2023
    %v2453 = vpop.f32.mrb[0].mxu0
    %v2454 = vadd.f32 0.0, %v2453
    %v2455 = vpop.f32.mrb[0].mxu0
    %v2456 = vpop.f32.mrb[0].mxu0
    %v2457 = vadd.f32 0.0, %v2456
    %v2458 = vpop.f32.mrb[0].mxu0
    %2459 = vmatprep.mubr.bf16.mxu0 %v2028
    %2460 = vmatmul.mubr.bf16.gmra.mrb[0].mxu0 %v2027
    %v2461 = vpop.f32.mrb[0].mxu0
    %v2462 = vadd.f32 0.0, %v2461
    %v2463 = vpop.f32.mrb[0].mxu0
    %v2464 = vpop.f32.mrb[0].mxu0
    %v2465 = vadd.f32 0.0, %v2464
    %v2466 = vpop.f32.mrb[0].mxu0
    %2467 = vmatprep.mubr.bf16.mxu0 %v2032
    %2468 = vmatmul.mubr.bf16.gmra.mrb[0].mxu0 %v2031
    %v2469 = vpop.f32.mrb[0].mxu0
    %v2470 = vadd.f32 0.0, %v2469
    %v2471 = vpop.f32.mrb[0].mxu0
    %v2472 = vpop.f32.mrb[0].mxu0
    %v2473 = vadd.f32 0.0, %v2472
    %v2474 = vpop.f32.mrb[0].mxu0
    %2475 = vmatprep.mubr.bf16.mxu0 %v2036
    %2476 = vmatmul.mubr.bf16.gmra.mrb[0].mxu0 %v2035
    %v2477 = vpop.f32.mrb[0].mxu0
    %v2478 = vadd.f32 0.0, %v2477
    %v2479 = vpop.f32.mrb[0].mxu0
    %v2480 = vpop.f32.mrb[0].mxu0
    %v2481 = vadd.f32 0.0, %v2480
    %v2482 = vpop.f32.mrb[0].mxu0
    %2483 = vmatprep.mubr.bf16.mxu0 %v2040
    %2484 = vmatmul.mubr.bf16.gmra.mrb[0].mxu0 %v2039
    %v2485 = vpop.f32.mrb[0].mxu0
    %v2486 = vadd.f32 0.0, %v2485
    %v2487 = vpop.f32.mrb[0].mxu0
    %v2488 = vpop.f32.mrb[0].mxu0
    %v2489 = vadd.f32 0.0, %v2488
    %v2490 = vpop.f32.mrb[0].mxu0
    %2491 = vdwg.mxu0
    %2492 = vmatprep.subr.bf16.mxu0 0
    %2493 = vmatpush1.bf16.msra.mxu0 %v2283
    %2494 = vmatprep.subr.bf16.mxu0 0
    %2495 = vmatpush1.bf16.msra.mxu0 %v2284
    %2496 = vmatprep.subr.bf16.mxu0 0
    %2497 = vmatpush1.bf16.msra.mxu0 %v2285
    %2498 = vmatprep.subr.bf16.mxu0 0
    %2499 = vmatpush1.bf16.msra.mxu0 %v2286
    %2500 = vmatprep.subr.bf16.mxu0 0
    %2501 = vmatpush1.bf16.msra.mxu0 %v2287
    %2502 = vmatprep.subr.bf16.mxu0 0
    %2503 = vmatpush1.bf16.msra.mxu0 %v2288
    %2504 = vmatprep.subr.bf16.mxu0 0
    %2505 = vmatpush1.bf16.msra.mxu0 %v2289
    %2506 = vmatprep.subr.bf16.mxu0 0
    %2507 = vmatpush1.bf16.msra.mxu0 %v2290
    %2508 = vmatprep.subr.bf16.mxu0 0
    %2509 = vmatpush1.bf16.msra.mxu0 %v2291
    %2510 = vmatprep.subr.bf16.mxu0 0
    %2511 = vmatpush1.bf16.msra.mxu0 %v2292
    %2512 = vmatprep.subr.bf16.mxu0 0
    %2513 = vmatpush1.bf16.msra.mxu0 %v2293
    %2514 = vmatprep.subr.bf16.mxu0 0
    %2515 = vmatpush1.bf16.msra.mxu0 %v2294
    %2516 = vmatprep.subr.bf16.mxu0 0
    %2517 = vmatpush1.bf16.msra.mxu0 %v2295
    %2518 = vmatprep.subr.bf16.mxu0 0
    %2519 = vmatpush1.bf16.msra.mxu0 %v2296
    %2520 = vmatprep.subr.bf16.mxu0 0
    %2521 = vmatpush1.bf16.msra.mxu0 %v2297
    %2522 = vmatprep.subr.bf16.mxu0 0
    %2523 = vmatpush1.bf16.msra.mxu0 %v2298
    %2524 = vmatprep.mubr.bf16.mxu0 %v1982
    %2525 = vmatmul.mubr.bf16.gmra.mrb[0].mxu0 %v1981
    %v2526 = vpop.f32.mrb[0].mxu0
    %v2527 = vadd.f32 %v2366, %v2526
    %v2528 = vpop.f32.mrb[0].mxu0
    %v2529 = vpop.f32.mrb[0].mxu0
    %v2530 = vadd.f32 %v2369, %v2529
    %v2531 = vpop.f32.mrb[0].mxu0
    %2532 = vmatprep.mubr.bf16.mxu0 %v1986
    %2533 = vmatmul.mubr.bf16.gmra.mrb[0].mxu0 %v1985
    %v2534 = vpop.f32.mrb[0].mxu0
    %v2535 = vadd.f32 %v2374, %v2534
    %v2536 = vpop.f32.mrb[0].mxu0
    %v2537 = vpop.f32.mrb[0].mxu0
    %v2538 = vadd.f32 %v2377, %v2537
    %v2539 = vpop.f32.mrb[0].mxu0
    %2540 = vmatprep.mubr.bf16.mxu0 %v1990
    %2541 = vmatmul.mubr.bf16.gmra.mrb[0].mxu0 %v1989
    %v2542 = vpop.f32.mrb[0].mxu0
    %v2543 = vadd.f32 %v2382, %v2542
    %v2544 = vpop.f32.mrb[0].mxu0
    %v2545 = vpop.f32.mrb[0].mxu0
    %v2546 = vadd.f32 %v2385, %v2545
    %v2547 = vpop.f32.mrb[0].mxu0
    %2548 = vmatprep.mubr.bf16.mxu0 %v1994
    %2549 = vmatmul.mubr.bf16.gmra.mrb[0].mxu0 %v1993
    %v2550 = vpop.f32.mrb[0].mxu0
    %v2551 = vadd.f32 %v2390, %v2550
    %v2552 = vpop.f32.mrb[0].mxu0
    %v2553 = vpop.f32.mrb[0].mxu0
    %v2554 = vadd.f32 %v2393, %v2553
    %v2555 = vpop.f32.mrb[0].mxu0
    %2556 = vmatprep.mubr.bf16.mxu0 %v1998
    %2557 = vmatmul.mubr.bf16.gmra.mrb[0].mxu0 %v1997
    %v2558 = vpop.f32.mrb[0].mxu0
    %v2559 = vadd.f32 %v2398, %v2558
    %v2560 = vpop.f32.mrb[0].mxu0
    %v2561 = vpop.f32.mrb[0].mxu0
    %v2562 = vadd.f32 %v2401, %v2561
    %v2563 = vpop.f32.mrb[0].mxu0
    %2564 = vmatprep.mubr.bf16.mxu0 %v2002
    %2565 = vmatmul.mubr.bf16.gmra.mrb[0].mxu0 %v2001
    %v2566 = vpop.f32.mrb[0].mxu0
    %v2567 = vadd.f32 %v2406, %v2566
    %v2568 = vpop.f32.mrb[0].mxu0
    %v2569 = vpop.f32.mrb[0].mxu0
    %v2570 = vadd.f32 %v2409, %v2569
    %v2571 = vpop.f32.mrb[0].mxu0
    %2572 = vmatprep.mubr.bf16.mxu0 %v2006
    %2573 = vmatmul.mubr.bf16.gmra.mrb[0].mxu0 %v2005
    %v2574 = vpop.f32.mrb[0].mxu0
    %v2575 = vadd.f32 %v2414, %v2574
    %v2576 = vpop.f32.mrb[0].mxu0
    %v2577 = vpop.f32.mrb[0].mxu0
    %v2578 = vadd.f32 %v2417, %v2577
    %v2579 = vpop.f32.mrb[0].mxu0
    %2580 = vmatprep.mubr.bf16.mxu0 %v2010
    %2581 = vmatmul.mubr.bf16.gmra.mrb[0].mxu0 %v2009
    %v2582 = vpop.f32.mrb[0].mxu0
    %v2583 = vadd.f32 %v2422, %v2582
    %v2584 = vpop.f32.mrb[0].mxu0
    %v2585 = vpop.f32.mrb[0].mxu0
    %v2586 = vadd.f32 %v2425, %v2585
    %v2587 = vpop.f32.mrb[0].mxu0
    %2588 = vmatprep.mubr.bf16.mxu0 %v2014
    %2589 = vmatmul.mubr.bf16.gmra.mrb[0].mxu0 %v2013
    %v2590 = vpop.f32.mrb[0].mxu0
    %v2591 = vadd.f32 %v2430, %v2590
    %v2592 = vpop.f32.mrb[0].mxu0
    %v2593 = vpop.f32.mrb[0].mxu0
    %v2594 = vadd.f32 %v2433, %v2593
    %v2595 = vpop.f32.mrb[0].mxu0
    %2596 = vmatprep.mubr.bf16.mxu0 %v2018
    %2597 = vmatmul.mubr.bf16.gmra.mrb[0].mxu0 %v2017
    %v2598 = vpop.f32.mrb[0].mxu0
    %v2599 = vadd.f32 %v2438, %v2598
    %v2600 = vpop.f32.mrb[0].mxu0
    %v2601 = vpop.f32.mrb[0].mxu0
    %v2602 = vadd.f32 %v2441, %v2601
    %v2603 = vpop.f32.mrb[0].mxu0
    %2604 = vmatprep.mubr.bf16.mxu0 %v2022
    %2605 = vmatmul.mubr.bf16.gmra.mrb[0].mxu0 %v2021
    %v2606 = vpop.f32.mrb[0].mxu0
    %v2607 = vadd.f32 %v2446, %v2606
    %v2608 = vpop.f32.mrb[0].mxu0
    %v2609 = vpop.f32.mrb[0].mxu0
    %v2610 = vadd.f32 %v2449, %v2609
    %v2611 = vpop.f32.mrb[0].mxu0
    %2612 = vmatprep.mubr.bf16.mxu0 %v2026
    %2613 = vmatmul.mubr.bf16.gmra.mrb[0].mxu0 %v2025
    %v2614 = vpop.f32.mrb[0].mxu0
    %v2615 = vadd.f32 %v2454, %v2614
    %v2616 = vpop.f32.mrb[0].mxu0
    %v2617 = vpop.f32.mrb[0].mxu0
    %v2618 = vadd.f32 %v2457, %v2617
    %v2619 = vpop.f32.mrb[0].mxu0
    %2620 = vmatprep.mubr.bf16.mxu0 %v2030
    %2621 = vmatmul.mubr.bf16.gmra.mrb[0].mxu0 %v2029
    %v2622 = vpop.f32.mrb[0].mxu0
    %v2623 = vadd.f32 %v2462, %v2622
    %v2624 = vpop.f32.mrb[0].mxu0
    %v2625 = vpop.f32.mrb[0].mxu0
    %v2626 = vadd.f32 %v2465, %v2625
    %v2627 = vpop.f32.mrb[0].mxu0
    %2628 = vmatprep.mubr.bf16.mxu0 %v2034
    %2629 = vmatmul.mubr.bf16.gmra.mrb[0].mxu0 %v2033
    %v2630 = vpop.f32.mrb[0].mxu0
    %v2631 = vadd.f32 %v2470, %v2630
    %v2632 = vpop.f32.mrb[0].mxu0
    %v2633 = vpop.f32.mrb[0].mxu0
    %v2634 = vadd.f32 %v2473, %v2633
    %v2635 = vpop.f32.mrb[0].mxu0
    %2636 = vmatprep.mubr.bf16.mxu0 %v2038
    %2637 = vmatmul.mubr.bf16.gmra.mrb[0].mxu0 %v2037
    %v2638 = vpop.f32.mrb[0].mxu0
    %v2639 = vadd.f32 %v2478, %v2638
    %v2640 = vpop.f32.mrb[0].mxu0
    %v2641 = vpop.f32.mrb[0].mxu0
    %v2642 = vadd.f32 %v2481, %v2641
    %v2643 = vpop.f32.mrb[0].mxu0
    %2644 = vmatprep.mubr.bf16.mxu0 %v2042
    %2645 = vmatmul.mubr.bf16.gmra.mrb[0].mxu0 %v2041
    %v2646 = vpop.f32.mrb[0].mxu0
    %v2647 = vadd.f32 %v2486, %v2646
    %v2648 = vpop.f32.mrb[0].mxu0
    %v2649 = vpop.f32.mrb[0].mxu0
    %v2650 = vadd.f32 %v2489, %v2649
    %v2651 = vpop.f32.mrb[0].mxu0
    %2652 = vdwg.mxu0
    %v2653 = vadd.f32 %v2043, %v2527
    %v2654 = vadd.f32 %v2044, %v2530
    %v2655 = vadd.f32 %v2045, %v2535
    %v2656 = vadd.f32 %v2046, %v2538
    %v2657 = vadd.f32 %v2047, %v2543
    %v2658 = vadd.f32 %v2048, %v2546
    %v2659 = vadd.f32 %v2049, %v2551
    %v2660 = vadd.f32 %v2050, %v2554
    %v2661 = vadd.f32 %v2051, %v2559
    %v2662 = vadd.f32 %v2052, %v2562
    %v2663 = vadd.f32 %v2053, %v2567
    %v2664 = vadd.f32 %v2054, %v2570
    %v2665 = vadd.f32 %v2055, %v2575
    %v2666 = vadd.f32 %v2056, %v2578
    %v2667 = vadd.f32 %v2057, %v2583
    %v2668 = vadd.f32 %v2058, %v2586
    %v2669 = vadd.f32 %v2059, %v2591
    %v2670 = vadd.f32 %v2060, %v2594
    %v2671 = vadd.f32 %v2061, %v2599
    %v2672 = vadd.f32 %v2062, %v2602
    %v2673 = vadd.f32 %v2063, %v2607
    %v2674 = vadd.f32 %v2064, %v2610
    %v2675 = vadd.f32 %v2065, %v2615
    %v2676 = vadd.f32 %v2066, %v2618
    %v2677 = vadd.f32 %v2067, %v2623
    %v2678 = vadd.f32 %v2068, %v2626
    %v2679 = vadd.f32 %v2069, %v2631
    %v2680 = vadd.f32 %v2070, %v2634
    %v2681 = vadd.f32 %v2071, %v2639
    %v2682 = vadd.f32 %v2072, %v2642
    %v2683 = vadd.f32 %v2073, %v2647
    %v2684 = vadd.f32 %v2074, %v2650
    %2685 = vst [vmem:[#allocation2] sm:$0xff] %v2653
    %2686 = vst [vmem:[#allocation2 + $0x8] sm:$0xff] %v2654
    %2687 = vst [vmem:[#allocation2 + $0x10] sm:$0xff] %v2655
    %2688 = vst [vmem:[#allocation2 + $0x18] sm:$0xff] %v2656
    %2689 = vst [vmem:[#allocation2 + $0x20] sm:$0xff] %v2657
    %2690 = vst [vmem:[#allocation2 + $0x28] sm:$0xff] %v2658
    %2691 = vst [vmem:[#allocation2 + $0x30] sm:$0xff] %v2659
    %2692 = vst [vmem:[#allocation2 + $0x38] sm:$0xff] %v2660
    %2693 = vst [vmem:[#allocation2 + $0x40] sm:$0xff] %v2661
    %2694 = vst [vmem:[#allocation2 + $0x48] sm:$0xff] %v2662
    %2695 = vst [vmem:[#allocation2 + $0x50] sm:$0xff] %v2663
    %2696 = vst [vmem:[#allocation2 + $0x58] sm:$0xff] %v2664
    %2697 = vst [vmem:[#allocation2 + $0x60] sm:$0xff] %v2665
    %2698 = vst [vmem:[#allocation2 + $0x68] sm:$0xff] %v2666
    %2699 = vst [vmem:[#allocation2 + $0x70] sm:$0xff] %v2667
    %2700 = vst [vmem:[#allocation2 + $0x78] sm:$0xff] %v2668
    %2701 = vst [vmem:[#allocation2 + $0x80] sm:$0xff] %v2669
    %2702 = vst [vmem:[#allocation2 + $0x88] sm:$0xff] %v2670
    %2703 = vst [vmem:[#allocation2 + $0x90] sm:$0xff] %v2671
    %2704 = vst [vmem:[#allocation2 + $0x98] sm:$0xff] %v2672
    %2705 = vst [vmem:[#allocation2 + $0xa0] sm:$0xff] %v2673
    %2706 = vst [vmem:[#allocation2 + $0xa8] sm:$0xff] %v2674
    %2707 = vst [vmem:[#allocation2 + $0xb0] sm:$0xff] %v2675
    %2708 = vst [vmem:[#allocation2 + $0xb8] sm:$0xff] %v2676
    %2709 = vst [vmem:[#allocation2 + $0xc0] sm:$0xff] %v2677
    %2710 = vst [vmem:[#allocation2 + $0xc8] sm:$0xff] %v2678
    %2711 = vst [vmem:[#allocation2 + $0xd0] sm:$0xff] %v2679
    %2712 = vst [vmem:[#allocation2 + $0xd8] sm:$0xff] %v2680
    %2713 = vst [vmem:[#allocation2 + $0xe0] sm:$0xff] %v2681
    %2714 = vst [vmem:[#allocation2 + $0xe8] sm:$0xff] %v2682
    %2715 = vst [vmem:[#allocation2 + $0xf0] sm:$0xff] %v2683
    %2716 = vst [vmem:[#allocation2 + $0xf8] sm:$0xff] %v2684
    // Predicated region
    $region38: #{tpu_custom_call.1} parent=1 // pred_check
      %p2717 = pneg %p63
    $region39: #{tpu_custom_call.1} parent=1 // pred_check_branch
      %2719 = sbr.rel (%p2717) target = $region41
    $region40: #{tpu_custom_call.1} parent=1 // pred_region
      %v2720 = vld [vmem:[#allocation2] sm:$0xff]
      %v2721 = vld [vmem:[#allocation2 + $0x8] sm:$0xff]
      %v2722 = vld [vmem:[#allocation2 + $0x10] sm:$0xff]
      %v2723 = vld [vmem:[#allocation2 + $0x18] sm:$0xff]
      %v2724 = vld [vmem:[#allocation2 + $0x20] sm:$0xff]
      %v2725 = vld [vmem:[#allocation2 + $0x28] sm:$0xff]
      %v2726 = vld [vmem:[#allocation2 + $0x30] sm:$0xff]
      %v2727 = vld [vmem:[#allocation2 + $0x38] sm:$0xff]
      %v2728 = vld [vmem:[#allocation2 + $0x40] sm:$0xff]
      %v2729 = vld [vmem:[#allocation2 + $0x48] sm:$0xff]
      %v2730 = vld [vmem:[#allocation2 + $0x50] sm:$0xff]
      %v2731 = vld [vmem:[#allocation2 + $0x58] sm:$0xff]
      %v2732 = vld [vmem:[#allocation2 + $0x60] sm:$0xff]
      %v2733 = vld [vmem:[#allocation2 + $0x68] sm:$0xff]
      %v2734 = vld [vmem:[#allocation2 + $0x70] sm:$0xff]
      %v2735 = vld [vmem:[#allocation2 + $0x78] sm:$0xff]
      %v2736 = vld [vmem:[#allocation2 + $0x80] sm:$0xff]
      %v2737 = vld [vmem:[#allocation2 + $0x88] sm:$0xff]
      %v2738 = vld [vmem:[#allocation2 + $0x90] sm:$0xff]
      %v2739 = vld [vmem:[#allocation2 + $0x98] sm:$0xff]
      %v2740 = vld [vmem:[#allocation2 + $0xa0] sm:$0xff]
      %v2741 = vld [vmem:[#allocation2 + $0xa8] sm:$0xff]
      %v2742 = vld [vmem:[#allocation2 + $0xb0] sm:$0xff]
      %v2743 = vld [vmem:[#allocation2 + $0xb8] sm:$0xff]
      %v2744 = vld [vmem:[#allocation2 + $0xc0] sm:$0xff]
      %v2745 = vld [vmem:[#allocation2 + $0xc8] sm:$0xff]
      %v2746 = vld [vmem:[#allocation2 + $0xd0] sm:$0xff]
      %v2747 = vld [vmem:[#allocation2 + $0xd8] sm:$0xff]
      %v2748 = vld [vmem:[#allocation2 + $0xe0] sm:$0xff]
      %v2749 = vld [vmem:[#allocation2 + $0xe8] sm:$0xff]
      %v2750 = vld [vmem:[#allocation2 + $0xf0] sm:$0xff]
      %v2751 = vld [vmem:[#allocation2 + $0xf8] sm:$0xff]
      %v2752 = vld [vmem:[%s4] sm:$0x1]
      %v2754 = vlaneseq
      %v2755 = vshrl.u32 %v2754, 7
      %v2756 = vsub.s32 0, %v2755
      %v2757 = vrot.slane %v2752, %v2756
      %v2759 = vadd.f32 %v2720, %v2757
      %v2760 = vadd.f32 %v2721, %v2757
      %v2761 = vadd.f32 %v2722, %v2757
      %v2762 = vadd.f32 %v2723, %v2757
      %v2763 = vadd.f32 %v2724, %v2757
      %v2764 = vadd.f32 %v2725, %v2757
      %v2765 = vadd.f32 %v2726, %v2757
      %v2766 = vadd.f32 %v2727, %v2757
      %v2767 = vadd.f32 %v2728, %v2757
      %v2768 = vadd.f32 %v2729, %v2757
      %v2769 = vadd.f32 %v2730, %v2757
      %v2770 = vadd.f32 %v2731, %v2757
      %v2771 = vadd.f32 %v2732, %v2757
      %v2772 = vadd.f32 %v2733, %v2757
      %v2773 = vadd.f32 %v2734, %v2757
      %v2774 = vadd.f32 %v2735, %v2757
      %v2775 = vadd.f32 %v2736, %v2757
      %v2776 = vadd.f32 %v2737, %v2757
      %v2777 = vadd.f32 %v2738, %v2757
      %v2778 = vadd.f32 %v2739, %v2757
      %v2779 = vadd.f32 %v2740, %v2757
      %v2780 = vadd.f32 %v2741, %v2757
      %v2781 = vadd.f32 %v2742, %v2757
      %v2782 = vadd.f32 %v2743, %v2757
      %v2783 = vadd.f32 %v2744, %v2757
      %v2784 = vadd.f32 %v2745, %v2757
      %v2785 = vadd.f32 %v2746, %v2757
      %v2786 = vadd.f32 %v2747, %v2757
      %v2787 = vadd.f32 %v2748, %v2757
      %v2788 = vadd.f32 %v2749, %v2757
      %v2789 = vadd.f32 %v2750, %v2757
      %v2790 = vadd.f32 %v2751, %v2757
      %2791 = vst [vmem:[#allocation9] sm:$0xff] %v2759
      %2792 = vst [vmem:[#allocation9 + $0x8] sm:$0xff] %v2760
      %2793 = vst [vmem:[#allocation9 + $0x10] sm:$0xff] %v2761
      %2794 = vst [vmem:[#allocation9 + $0x18] sm:$0xff] %v2762
      %2795 = vst [vmem:[#allocation9 + $0x20] sm:$0xff] %v2763
      %2796 = vst [vmem:[#allocation9 + $0x28] sm:$0xff] %v2764
      %2797 = vst [vmem:[#allocation9 + $0x30] sm:$0xff] %v2765
      %2798 = vst [vmem:[#allocation9 + $0x38] sm:$0xff] %v2766
      %2799 = vst [vmem:[#allocation9 + $0x40] sm:$0xff] %v2767
      %2800 = vst [vmem:[#allocation9 + $0x48] sm:$0xff] %v2768
      %2801 = vst [vmem:[#allocation9 + $0x50] sm:$0xff] %v2769
      %2802 = vst [vmem:[#allocation9 + $0x58] sm:$0xff] %v2770
      %2803 = vst [vmem:[#allocation9 + $0x60] sm:$0xff] %v2771
      %2804 = vst [vmem:[#allocation9 + $0x68] sm:$0xff] %v2772
      %2805 = vst [vmem:[#allocation9 + $0x70] sm:$0xff] %v2773
      %2806 = vst [vmem:[#allocation9 + $0x78] sm:$0xff] %v2774
      %2807 = vst [vmem:[#allocation9 + $0x80] sm:$0xff] %v2775
      %2808 = vst [vmem:[#allocation9 + $0x88] sm:$0xff] %v2776
      %2809 = vst [vmem:[#allocation9 + $0x90] sm:$0xff] %v2777
      %2810 = vst [vmem:[#allocation9 + $0x98] sm:$0xff] %v2778
      %2811 = vst [vmem:[#allocation9 + $0xa0] sm:$0xff] %v2779
      %2812 = vst [vmem:[#allocation9 + $0xa8] sm:$0xff] %v2780
      %2813 = vst [vmem:[#allocation9 + $0xb0] sm:$0xff] %v2781
      %2814 = vst [vmem:[#allocation9 + $0xb8] sm:$0xff] %v2782
      %2815 = vst [vmem:[#allocation9 + $0xc0] sm:$0xff] %v2783
      %2816 = vst [vmem:[#allocation9 + $0xc8] sm:$0xff] %v2784
      %2817 = vst [vmem:[#allocation9 + $0xd0] sm:$0xff] %v2785
      %2818 = vst [vmem:[#allocation9 + $0xd8] sm:$0xff] %v2786
      %2819 = vst [vmem:[#allocation9 + $0xe0] sm:$0xff] %v2787
      %2820 = vst [vmem:[#allocation9 + $0xe8] sm:$0xff] %v2788
      %2821 = vst [vmem:[#allocation9 + $0xf0] sm:$0xff] %v2789
      %2822 = vst [vmem:[#allocation9 + $0xf8] sm:$0xff] %v2790
    $region41: #{tpu_custom_call.1} parent=1 // pred_fallthru
      _
    // Predicated region
    $region42: #{tpu_custom_call.1} parent=1 // pred_check
      _
    $region43: #{tpu_custom_call.1} parent=1 // pred_check_branch
      %2824 = sbr.rel (0) target = $region45
    $region44: #{tpu_custom_call.1} parent=1 // pred_region
      %s2826 = ssub.s32 4096, 4096
      %2827 = vsyncadd [#allocation5], %s2826
      %s2828 = sshll.u32 [#allocation9], 4
      %s2829 = int_to_ptr.vmem [resolvable:$true] %s2828
      %2834 = dma.vmem_to_hbm [thread:$0]  %s2829, 4096, %s5, [#allocation5], 128, 128, 8
    $region45: #{tpu_custom_call.1} parent=1 // pred_fallthru
      _
    // Predicated region
    $region46: #{tpu_custom_call.1} parent=1 // pred_check
      _
    $region47: #{tpu_custom_call.1} parent=1 // pred_check_branch
      %2836 = sbr.rel (0) target = $region49
    $region48: #{tpu_custom_call.1} parent=1 // pred_region
      %2837 = dma.done [#allocation5], 4096
    $region49: #{tpu_custom_call.1} parent=1 // pred_fallthru
      _
    %2838 = vsyncpa [#allocation4], 1
    %2839 = vsyncpa [#allocation7], 1
    %2840 = vsyncpa [#allocation5], 1

</llo_original>
